<compile_context>
chip_gen: v7x
topology: tpu7x:2x2x1
jax: 0.10.0
libtpu: 0.0.40
codegen_flags: <defaults>
</compile_context>

<pallas_src>
import math

import jax
import jax.numpy as jnp
import numpy as np
from jax import lax
from jax.experimental import pallas as pl
from jax.experimental.pallas import tpu as pltpu

# ---- config (small, consistent with the module) ----
HIDDEN = 32
NUM_HEADS = 4
HEAD = HIDDEN // NUM_HEADS
LN_EPS = 1e-12


def _bert_attention_kernel(x_ref, mask_ref, wqkv_ref, wo_ref, bqkv_ref, vec_ref,
                           out_ref):
    # x_ref:    (R, H)          flattened (batch*seq) rows of this chunk
    # mask_ref: (R, R)          additive mask; block-diagonal over batches, the
    #                           per-key attention mask on the diagonal blocks
    # wqkv_ref: (H, 3H)         packed [Wq.T * scale | Wk.T | Wv.T]
    # wo_ref:   (NH, HEAD, H)   Wo.T split by input head
    # bqkv_ref: (1, 3H)         packed [bq * scale | bk | bv]
    # vec_ref:  (3, 1, H)       [b_out, ln_gamma, ln_beta]
    x = x_ref[...]                       # (R, H)
    mask = mask_ref[...]                 # (R, R)

    # Fused Q/K/V projection: one (R,H)@(H,3H) MXU push (scale already folded in).
    qkv = jnp.dot(x, wqkv_ref[...], preferred_element_type=jnp.float32) \
        + bqkv_ref[...]                  # (R, 3H)

    def take_heads(base):                # lane slices -> head-batched (NH, R, HEAD)
        return jnp.stack(
            [qkv[:, base + h * HEAD: base + (h + 1) * HEAD]
             for h in range(NUM_HEADS)], axis=0)

    q = take_heads(0)                    # (NH, R, HEAD)
    k = take_heads(HIDDEN)
    v = take_heads(2 * HIDDEN)

    # Head-batched scores; the block-diagonal mask keeps batches separate and
    # applies the padding mask, so one softmax chain covers all heads & batches.
    s = jnp.einsum('hqd,hkd->hqk', q, k, preferred_element_type=jnp.float32)
    s = s + mask[None, :, :]             # (NH, R, R)

    m = jnp.max(s, axis=-1, keepdims=True)
    e = jnp.exp(s - m)
    denom = jnp.sum(e, axis=-1, keepdims=True)
    p = e * pl.reciprocal(denom, approx=True)   # EUP slot
    # attention-probs dropout -> identity at inference

    ctx = jnp.einsum('hqk,hkd->hqd', p, v, preferred_element_type=jnp.float32)

    # Output projection: head-batched matmul against Wo.T rows of each head,
    # then a cheap sum over the (major) head axis = implicit head concat.
    op = jnp.einsum('hqd,hdf->hqf', ctx, wo_ref[...],
                    preferred_element_type=jnp.float32)   # (NH, R, H)
    o = jnp.sum(op, axis=0)                                # (R, H)

    # BertSelfOutput: dense bias + (dropout = id) + residual + LayerNorm
    r = o + vec_ref[0, :, :] + x
    mu = jnp.mean(r, axis=-1, keepdims=True)
    var = jnp.mean((r - mu) ** 2, axis=-1, keepdims=True)
    norm = (r - mu) * lax.rsqrt(var + LN_EPS)
    out_ref[...] = norm * vec_ref[1, :, :] + vec_ref[2, :, :]


def bert_attention(x, attn_mask, params):
    """x: (B, S, H) f32.  attn_mask: (B, 1, S) additive f32 mask.
    params: PyTorch-layout (wq, bq, wk, bk, wv, bv, wo, bo, gamma, beta) with
    weights (out, in) = (H, H) and vectors (1, H)."""
    B, S, H = x.shape
    assert H == HIDDEN and H == NUM_HEADS * HEAD
    wq, bq, wk, bk, wv, bv, wo, bo, gamma, beta = params
    scale = 1.0 / math.sqrt(HEAD)

    # ---- one-time host-side repacking (weights only; scale folded into Wq/bq) --
    wqkv = jnp.concatenate([wq.T * scale, wk.T, wv.T], axis=1)        # (H, 3H)
    bqkv = jnp.concatenate([bq * scale, bk, bv], axis=1)              # (1, 3H)
    wo_h = wo.T.reshape(NUM_HEADS, HEAD, H)                           # (NH, HEAD, H)
    vecs = jnp.concatenate([bo, gamma, beta], axis=0).reshape(3, 1, H)  # (3,1,H)

    rows = B * S
    # Combined additive mask over flattened rows: attention mask on the diagonal
    # batch blocks, large negative off-block so rows never attend across batches.
    am = attn_mask.reshape(B, S)                                      # additive (B,S)
    same = jnp.repeat(jnp.repeat(jnp.eye(B, dtype=bool), S, axis=0), S, axis=1)
    mask_full = jnp.where(
        same, jnp.broadcast_to(am.reshape(1, rows), (rows, rows)),
        jnp.float32(-1e9))                                            # (rows, rows)

    # Size-gated chunking: one grid step at toy sizes (no overhead tax on
    # single-TC v5e/v6e); split across v7x's two TensorCores only when each
    # chunk has lane-aligned, meaningful work.
    n_chunks = 2 if (B % 2 == 0 and rows % 256 == 0 and rows // 2 >= 256) else 1
    R = rows // n_chunks

    x2 = x.reshape(rows, H)   # rows on sublanes, hidden on lanes

    out = pl.pallas_call(
        _bert_attention_kernel,
        out_shape=jax.ShapeDtypeStruct((rows, H), jnp.float32),
        grid=(n_chunks,),
        in_specs=[
            pl.BlockSpec((R, H), lambda i: (i, 0)),                    # x rows
            pl.BlockSpec((R, R), lambda i: (i, i)),                    # mask (diag block)
            pl.BlockSpec((H, 3 * H), lambda i: (0, 0)),                # packed Wq/Wk/Wv
            pl.BlockSpec((NUM_HEADS, HEAD, H), lambda i: (0, 0, 0)),   # Wo per head
            pl.BlockSpec((1, 3 * H), lambda i: (0, 0)),                # packed biases
            pl.BlockSpec((3, 1, H), lambda i: (0, 0, 0)),              # bo/gamma/beta
        ],
        out_specs=pl.BlockSpec((R, H), lambda i: (i, 0)),
        compiler_params=pltpu.CompilerParams(dimension_semantics=("parallel",)),
    )(x2, mask_full, wqkv, wo_h, bqkv, vecs)
    return out.reshape(B, S, H)


# ---- pure-JAX reference (mirrors the PyTorch forward, join_mask=None) ----
def bert_attention_ref(x, attn_mask, params):
    wq, bq, wk, bk, wv, bv, wo, bo, gamma, beta = params
    B, S, H = x.shape
    q = x @ wq.T + bq[0]
    k = x @ wk.T + bk[0]
    v = x @ wv.T + bv[0]

    def split(t):  # (B,S,H) -> (B,nh,S,hd)
        return t.reshape(B, S, NUM_HEADS, HEAD).transpose(0, 2, 1, 3)

    qh, kh, vh = split(q), split(k), split(v)
    scores = jnp.einsum('bnqd,bnkd->bnqk', qh, kh) / math.sqrt(HEAD)
    scores = scores + attn_mask[:, None, :, :]          # (B,1,1,S) broadcast
    probs = jax.nn.softmax(scores, axis=-1)
    ctx = jnp.einsum('bnqk,bnkd->bnqd', probs, vh)
    ctx = ctx.transpose(0, 2, 1, 3).reshape(B, S, H)
    o = ctx @ wo.T + bo[0]
    r = o + x
    mu = jnp.mean(r, axis=-1, keepdims=True)
    var = jnp.mean((r - mu) ** 2, axis=-1, keepdims=True)
    return (r - mu) / jnp.sqrt(var + LN_EPS) * gamma[0] + beta[0]


if __name__ == "__main__":
    B, S, H = 2, 8, HIDDEN
    key = jax.random.PRNGKey(0)
    keys = jax.random.split(key, 12)

    x = jax.random.normal(keys[0], (B, S, H), dtype=jnp.float32)

    # Standard BERT extended attention mask, kept compact as (B, 1, S) additive.
    valid = jnp.ones((B, S), dtype=jnp.float32).at[1, 6:].set(0.0)
    attn_mask = ((1.0 - valid) * -10000.0)[:, None, :]          # (B,1,S)

    def init_linear(k, fan_in, shape):
        bound = 1.0 / math.sqrt(fan_in)
        return jax.random.uniform(k, shape, jnp.float32, -bound, bound)

    params = (
        init_linear(keys[1], H, (H, H)), init_linear(keys[2], H, (1, H)),   # query
        init_linear(keys[3], H, (H, H)), init_linear(keys[4], H, (1, H)),   # key
        init_linear(keys[5], H, (H, H)), init_linear(keys[6], H, (1, H)),   # value
        init_linear(keys[7], H, (H, H)), init_linear(keys[8], H, (1, H)),   # output dense
        jnp.ones((1, H), jnp.float32), jnp.zeros((1, H), jnp.float32),      # LN gamma/beta
    )

    out = jax.block_until_ready(bert_attention(x, attn_mask, params))
    ref = bert_attention_ref(x, attn_mask, params)
    # slightly relaxed tolerance: softmax denom uses the EUP approx reciprocal
    np.testing.assert_allclose(np.asarray(out), np.asarray(ref), rtol=2e-3, atol=2e-3)

    print("KERNEL_OK")
</pallas_src>

<mosaic_0001>
module attributes {stable_mosaic.version = 11 : i64} {
  func.func @_bert_attention_kernel(%arg0: i32, %arg1: memref<16x32xf32, #tpu.memory_space<vmem>>, %arg2: memref<16x16xf32, #tpu.memory_space<vmem>>, %arg3: memref<32x96xf32, #tpu.memory_space<vmem>>, %arg4: memref<4x8x32xf32, #tpu.memory_space<vmem>>, %arg5: memref<1x96xf32, #tpu.memory_space<vmem>>, %arg6: memref<3x1x32xf32, #tpu.memory_space<vmem>>, %arg7: memref<16x32xf32, #tpu.memory_space<vmem>>) attributes {dimension_semantics = [#tpu.dimension_semantics<parallel>], iteration_bounds = array<i64: 1>, scalar_prefetch = 0 : i64, scratch_operands = 0 : i64, tpu.core_type = #tpu.core_type<tc>, window_params = [{transform_indices = @transform_0, window_bounds = array<i64: 16, 32>}, {transform_indices = @transform_1, window_bounds = array<i64: 16, 16>}, {pipeline_mode = #tpu.pipeline_mode<synchronous>, transform_indices = @transform_2, window_bounds = array<i64: 32, 96>}, {pipeline_mode = #tpu.pipeline_mode<synchronous>, transform_indices = @transform_3, window_bounds = array<i64: 4, 8, 32>}, {pipeline_mode = #tpu.pipeline_mode<synchronous>, transform_indices = @transform_4, window_bounds = array<i64: 1, 96>}, {pipeline_mode = #tpu.pipeline_mode<synchronous>, transform_indices = @transform_5, window_bounds = array<i64: 3, 1, 32>}, {transform_indices = @transform_6, window_bounds = array<i64: 16, 32>}]} {
    %c0 = arith.constant 0 : index
    %c0_0 = arith.constant 0 : index
    %0 = vector.load %arg1[%c0, %c0_0] : memref<16x32xf32, #tpu.memory_space<vmem>>, vector<16x32xf32>
    %c0_1 = arith.constant 0 : index
    %c0_2 = arith.constant 0 : index
    %1 = vector.load %arg2[%c0_1, %c0_2] : memref<16x16xf32, #tpu.memory_space<vmem>>, vector<16x16xf32>
    %c0_3 = arith.constant 0 : index
    %c0_4 = arith.constant 0 : index
    %2 = vector.load %arg3[%c0_3, %c0_4] : memref<32x96xf32, #tpu.memory_space<vmem>>, vector<32x96xf32>
    %cst = arith.constant dense<0.000000e+00> : vector<16x96xf32>
    %3 = tpu.matmul %0, %2, %cst {dimension_numbers = #tpu.dot_dimension_numbers<[1], [0], [0], [1], [0, 0, 1, 1], [], []>} : vector<16x32xf32>, vector<32x96xf32>, vector<16x96xf32> -> vector<16x96xf32>
    %c0_5 = arith.constant 0 : index
    %c0_6 = arith.constant 0 : index
    %4 = vector.load %arg5[%c0_5, %c0_6] : memref<1x96xf32, #tpu.memory_space<vmem>>, vector<1x96xf32>
    %5 = vector.broadcast %4 : vector<1x96xf32> to vector<16x96xf32>
    %6 = arith.addf %3, %5 : vector<16x96xf32>
    %7 = vector.extract_strided_slice %6 {offsets = [0, 0], sizes = [16, 8], strides = [1, 1]} : vector<16x96xf32> to vector<16x8xf32>
    %8 = vector.extract_strided_slice %6 {offsets = [0, 8], sizes = [16, 8], strides = [1, 1]} : vector<16x96xf32> to vector<16x8xf32>
    %9 = vector.extract_strided_slice %6 {offsets = [0, 16], sizes = [16, 8], strides = [1, 1]} : vector<16x96xf32> to vector<16x8xf32>
    %10 = vector.extract_strided_slice %6 {offsets = [0, 24], sizes = [16, 8], strides = [1, 1]} : vector<16x96xf32> to vector<16x8xf32>
    %11 = vector.shape_cast %7 : vector<16x8xf32> to vector<1x16x8xf32>
    %12 = vector.shape_cast %8 : vector<16x8xf32> to vector<1x16x8xf32>
    %13 = vector.shape_cast %9 : vector<16x8xf32> to vector<1x16x8xf32>
    %14 = vector.shape_cast %10 : vector<16x8xf32> to vector<1x16x8xf32>
    %15 = tpu.concatenate %11, %12, %13, %14 in 0 : vector<1x16x8xf32>, vector<1x16x8xf32>, vector<1x16x8xf32>, vector<1x16x8xf32> -> vector<4x16x8xf32>
    %16 = vector.extract_strided_slice %6 {offsets = [0, 32], sizes = [16, 8], strides = [1, 1]} : vector<16x96xf32> to vector<16x8xf32>
    %17 = vector.extract_strided_slice %6 {offsets = [0, 40], sizes = [16, 8], strides = [1, 1]} : vector<16x96xf32> to vector<16x8xf32>
    %18 = vector.extract_strided_slice %6 {offsets = [0, 48], sizes = [16, 8], strides = [1, 1]} : vector<16x96xf32> to vector<16x8xf32>
    %19 = vector.extract_strided_slice %6 {offsets = [0, 56], sizes = [16, 8], strides = [1, 1]} : vector<16x96xf32> to vector<16x8xf32>
    %20 = vector.shape_cast %16 : vector<16x8xf32> to vector<1x16x8xf32>
    %21 = vector.shape_cast %17 : vector<16x8xf32> to vector<1x16x8xf32>
    %22 = vector.shape_cast %18 : vector<16x8xf32> to vector<1x16x8xf32>
    %23 = vector.shape_cast %19 : vector<16x8xf32> to vector<1x16x8xf32>
    %24 = tpu.concatenate %20, %21, %22, %23 in 0 : vector<1x16x8xf32>, vector<1x16x8xf32>, vector<1x16x8xf32>, vector<1x16x8xf32> -> vector<4x16x8xf32>
    %25 = vector.extract_strided_slice %6 {offsets = [0, 64], sizes = [16, 8], strides = [1, 1]} : vector<16x96xf32> to vector<16x8xf32>
    %26 = vector.extract_strided_slice %6 {offsets = [0, 72], sizes = [16, 8], strides = [1, 1]} : vector<16x96xf32> to vector<16x8xf32>
    %27 = vector.extract_strided_slice %6 {offsets = [0, 80], sizes = [16, 8], strides = [1, 1]} : vector<16x96xf32> to vector<16x8xf32>
    %28 = vector.extract_strided_slice %6 {offsets = [0, 88], sizes = [16, 8], strides = [1, 1]} : vector<16x96xf32> to vector<16x8xf32>
    %29 = vector.shape_cast %25 : vector<16x8xf32> to vector<1x16x8xf32>
    %30 = vector.shape_cast %26 : vector<16x8xf32> to vector<1x16x8xf32>
    %31 = vector.shape_cast %27 : vector<16x8xf32> to vector<1x16x8xf32>
    %32 = vector.shape_cast %28 : vector<16x8xf32> to vector<1x16x8xf32>
    %33 = tpu.concatenate %29, %30, %31, %32 in 0 : vector<1x16x8xf32>, vector<1x16x8xf32>, vector<1x16x8xf32>, vector<1x16x8xf32> -> vector<4x16x8xf32>
    "tpu.trace_start"() <{level = 10 : i32, message = "hqd,hkd->hqk"}> : () -> ()
    %cst_7 = arith.constant dense<0.000000e+00> : vector<4x16x16xf32>
    %34 = tpu.matmul %15, %24, %cst_7 {dimension_numbers = #tpu.dot_dimension_numbers<[2], [2], [1], [1], [0, 0, 0, 1, 1, 1], [0], [0]>} : vector<4x16x8xf32>, vector<4x16x8xf32>, vector<4x16x16xf32> -> vector<4x16x16xf32>
    "tpu.trace_stop"() : () -> ()
    %35 = vector.shape_cast %1 : vector<16x16xf32> to vector<1x16x16xf32>
    %36 = vector.broadcast %35 : vector<1x16x16xf32> to vector<4x16x16xf32>
    %37 = arith.addf %34, %36 : vector<4x16x16xf32>
    %cst_8 = arith.constant dense<0xFF800000> : vector<4x16xf32>
    %38 = vector.multi_reduction <maximumf>, %37, %cst_8 [2] : vector<4x16x16xf32> to vector<4x16xf32>
    %39 = vector.shape_cast %38 : vector<4x16xf32> to vector<4x16x1xf32>
    %40 = vector.broadcast %39 : vector<4x16x1xf32> to vector<4x16x16xf32>
    %41 = arith.subf %37, %40 : vector<4x16x16xf32>
    %42 = math.exp %41 : vector<4x16x16xf32>
    %cst_9 = arith.constant dense<0.000000e+00> : vector<4x16xf32>
    %43 = vector.multi_reduction <add>, %42, %cst_9 [2] : vector<4x16x16xf32> to vector<4x16xf32>
    %44 = vector.shape_cast %43 : vector<4x16xf32> to vector<4x16x1xf32>
    %45 = tpu.reciprocal %44 {approx = true} : vector<4x16x1xf32> -> vector<4x16x1xf32>
    %46 = vector.broadcast %45 : vector<4x16x1xf32> to vector<4x16x16xf32>
    %47 = arith.mulf %42, %46 : vector<4x16x16xf32>
    "tpu.trace_start"() <{level = 10 : i32, message = "hqk,hkd->hqd"}> : () -> ()
    %cst_10 = arith.constant dense<0.000000e+00> : vector<4x16x8xf32>
    %48 = tpu.matmul %47, %33, %cst_10 {dimension_numbers = #tpu.dot_dimension_numbers<[2], [1], [1], [2], [0, 0, 0, 1, 1, 2], [0], [0]>} : vector<4x16x16xf32>, vector<4x16x8xf32>, vector<4x16x8xf32> -> vector<4x16x8xf32>
    "tpu.trace_stop"() : () -> ()
    %c0_11 = arith.constant 0 : index
    %c0_12 = arith.constant 0 : index
    %c0_13 = arith.constant 0 : index
    %49 = vector.load %arg4[%c0_11, %c0_12, %c0_13] : memref<4x8x32xf32, #tpu.memory_space<vmem>>, vector<4x8x32xf32>
    "tpu.trace_start"() <{level = 10 : i32, message = "hqd,hdf->hqf"}> : () -> ()
    %cst_14 = arith.constant dense<0.000000e+00> : vector<4x16x32xf32>
    %50 = tpu.matmul %48, %49, %cst_14 {dimension_numbers = #tpu.dot_dimension_numbers<[2], [1], [1], [2], [0, 0, 0, 1, 1, 2], [0], [0]>} : vector<4x16x8xf32>, vector<4x8x32xf32>, vector<4x16x32xf32> -> vector<4x16x32xf32>
    "tpu.trace_stop"() : () -> ()
    %cst_15 = arith.constant dense<0.000000e+00> : vector<16x32xf32>
    %51 = vector.multi_reduction <add>, %50, %cst_15 [0] : vector<4x16x32xf32> to vector<16x32xf32>
    %c0_16 = arith.constant 0 : index
    %c0_17 = arith.constant 0 : index
    %c0_18 = arith.constant 0 : index
    %52 = vector.load %arg6[%c0_16, %c0_17, %c0_18] : memref<3x1x32xf32, #tpu.memory_space<vmem>>, vector<1x1x32xf32>
    %53 = vector.shape_cast %52 : vector<1x1x32xf32> to vector<1x32xf32>
    %54 = vector.broadcast %53 : vector<1x32xf32> to vector<16x32xf32>
    %55 = arith.addf %51, %54 : vector<16x32xf32>
    %56 = arith.addf %55, %0 : vector<16x32xf32>
    %cst_19 = arith.constant dense<0.000000e+00> : vector<16xf32>
    %57 = vector.multi_reduction <add>, %56, %cst_19 [1] : vector<16x32xf32> to vector<16xf32>
    %58 = vector.shape_cast %57 : vector<16xf32> to vector<16x1xf32>
    %cst_20 = arith.constant 3.200000e+01 : f32
    %59 = vector.broadcast %cst_20 : f32 to vector<16x1xf32>
    %60 = arith.divf %58, %59 : vector<16x1xf32>
    %61 = vector.broadcast %60 : vector<16x1xf32> to vector<16x32xf32>
    %62 = arith.subf %56, %61 : vector<16x32xf32>
    %63 = arith.mulf %62, %62 : vector<16x32xf32>
    %cst_21 = arith.constant dense<0.000000e+00> : vector<16xf32>
    %64 = vector.multi_reduction <add>, %63, %cst_21 [1] : vector<16x32xf32> to vector<16xf32>
    %65 = vector.shape_cast %64 : vector<16xf32> to vector<16x1xf32>
    %cst_22 = arith.constant 3.200000e+01 : f32
    %66 = vector.broadcast %cst_22 : f32 to vector<16x1xf32>
    %67 = arith.divf %65, %66 : vector<16x1xf32>
    %68 = vector.broadcast %60 : vector<16x1xf32> to vector<16x32xf32>
    %69 = arith.subf %56, %68 : vector<16x32xf32>
    %cst_23 = arith.constant 9.99999996E-13 : f32
    %70 = vector.broadcast %cst_23 : f32 to vector<16x1xf32>
    %71 = arith.addf %67, %70 : vector<16x1xf32>
    %72 = math.rsqrt %71 : vector<16x1xf32>
    %73 = vector.broadcast %72 : vector<16x1xf32> to vector<16x32xf32>
    %74 = arith.mulf %69, %73 : vector<16x32xf32>
    %c1 = arith.constant 1 : index
    %c0_24 = arith.constant 0 : index
    %c0_25 = arith.constant 0 : index
    %75 = vector.load %arg6[%c1, %c0_24, %c0_25] : memref<3x1x32xf32, #tpu.memory_space<vmem>>, vector<1x1x32xf32>
    %76 = vector.shape_cast %75 : vector<1x1x32xf32> to vector<1x32xf32>
    %77 = vector.broadcast %76 : vector<1x32xf32> to vector<16x32xf32>
    %78 = arith.mulf %74, %77 : vector<16x32xf32>
    %c2 = arith.constant 2 : index
    %c0_26 = arith.constant 0 : index
    %c0_27 = arith.constant 0 : index
    %79 = vector.load %arg6[%c2, %c0_26, %c0_27] : memref<3x1x32xf32, #tpu.memory_space<vmem>>, vector<1x1x32xf32>
    %80 = vector.shape_cast %79 : vector<1x1x32xf32> to vector<1x32xf32>
    %81 = vector.broadcast %80 : vector<1x32xf32> to vector<16x32xf32>
    %82 = arith.addf %78, %81 : vector<16x32xf32>
    %c0_28 = arith.constant 0 : index
    %c0_29 = arith.constant 0 : index
    %83 = vector.load %arg7[%c0_28, %c0_29] : memref<16x32xf32, #tpu.memory_space<vmem>>, vector<16x32xf32>
    tpu.vector_store %arg7[%c0_28, %c0_29], %82 {strides = array<i32>} : memref<16x32xf32, #tpu.memory_space<vmem>>, vector<16x32xf32>,
    return
  }
  func.func @transform_0(%arg0: i32) -> (i32, i32) {
    %c0_i32 = arith.constant 0 : i32
    %c0_i32_0 = arith.constant 0 : i32
    return %arg0, %c0_i32 : i32, i32
  }
  func.func @transform_1(%arg0: i32) -> (i32, i32) {
    %c0_i32 = arith.constant 0 : i32
    return %arg0, %arg0 : i32, i32
  }
  func.func @transform_2(%arg0: i32) -> (i32, i32) {
    %c0_i32 = arith.constant 0 : i32
    %c0_i32_0 = arith.constant 0 : i32
    %c0_i32_1 = arith.constant 0 : i32
    return %c0_i32, %c0_i32_0 : i32, i32
  }
  func.func @transform_3(%arg0: i32) -> (i32, i32, i32) {
    %c0_i32 = arith.constant 0 : i32
    %c0_i32_0 = arith.constant 0 : i32
    %c0_i32_1 = arith.constant 0 : i32
    %c0_i32_2 = arith.constant 0 : i32
    return %c0_i32, %c0_i32_0, %c0_i32_1 : i32, i32, i32
  }
  func.func @transform_4(%arg0: i32) -> (i32, i32) {
    %c0_i32 = arith.constant 0 : i32
    %c0_i32_0 = arith.constant 0 : i32
    %c0_i32_1 = arith.constant 0 : i32
    return %c0_i32, %c0_i32_0 : i32, i32
  }
  func.func @transform_5(%arg0: i32) -> (i32, i32, i32) {
    %c0_i32 = arith.constant 0 : i32
    %c0_i32_0 = arith.constant 0 : i32
    %c0_i32_1 = arith.constant 0 : i32
    %c0_i32_2 = arith.constant 0 : i32
    return %c0_i32, %c0_i32_0, %c0_i32_1 : i32, i32, i32
  }
  func.func @transform_6(%arg0: i32) -> (i32, i32) {
    %c0_i32 = arith.constant 0 : i32
    %c0_i32_0 = arith.constant 0 : i32
    return %arg0, %c0_i32 : i32, i32
  }
}

</mosaic_0001>

<llo_original>
// kernel: tpu_custom_call.1
$region0: #{tpu_custom_call.1}
  #allocation0 [shape = 'u32[]', space=smem, size = 0x4, offset = 0x4, fixed_abs, tag = 'smem constant byte address 0x4 - core index']
  #allocation1 [shape = 'u32[144,128]{1,0:T(1,128)}', space=vmem, size = 0x12000, scoped, tag = 'internal scratch']
  %s0 = inlined_call_operand.hbm [shape: f32[16,32], index: 0, kind: input, shape index: {}]
  %s1 = inlined_call_operand.hbm [shape: f32[16,16], index: 1, kind: input, shape index: {}]
  %s2 = inlined_call_operand.hbm [shape: f32[32,96], index: 2, kind: input, shape index: {}]
  %s3 = inlined_call_operand.hbm [shape: f32[4,8,32], index: 3, kind: input, shape index: {}]
  %s4 = inlined_call_operand.vmem [shape: f32[1,96], index: 4, kind: input, shape index: {}]
  %s5 = inlined_call_operand.vmem [shape: f32[3,1,32], index: 5, kind: input, shape index: {}]
  %s6 = inlined_call_operand.hbm [shape: f32[16,32], index: 6, kind: output, shape index: {}]
  %s7 = sld [smem:[#allocation0]]
  $region50: #{tpu_custom_call.1} parent=0
    _
  %s9 = ssub.s32 1, %s7
  %s10 = scalar_select 0, %s9, %s7
  $region1: #{tpu_custom_call.1} parent=0
    #allocation2 [shape = 'u8[8192]{0}', space=vmem, size = 0x2000, scoped, tag = 'input window, operand 0, single buffered']
    #allocation3 [shape = 's32[1]{0}', space=sflag, size = 0x4, scoped, tag = 'scoped memory for tpu_custom_call.1']
    #allocation4 [shape = 's32[1]{0}', space=sflag, size = 0x4, scoped, tag = 'scoped memory for tpu_custom_call.1']
    #allocation5 [shape = 'u8[8192]{0}', space=vmem, size = 0x2000, scoped, tag = 'input window, operand 1, single buffered']
    #allocation6 [shape = 's32[1]{0}', space=sflag, size = 0x4, scoped, tag = 'scoped memory for tpu_custom_call.1']
    #allocation7 [shape = 'u8[16384]{0}', space=vmem, size = 0x4000, scoped, tag = 'input window, operand 2, single buffered']
    #allocation8 [shape = 'u8[16384]{0}', space=vmem, size = 0x4000, scoped, tag = 'input window, operand 3, single buffered']
    #allocation9 [shape = 's32[1]{0}', space=sflag, size = 0x4, scoped, tag = 'scoped memory for tpu_custom_call.1']
    #allocation10 [shape = 'u8[8192]{0}', space=vmem, size = 0x2000, scoped, tag = 'output window, operand 0, single buffered']
    %11 = vsyncpa [#allocation3], 0
    %12 = vsyncpa [#allocation6], 0
    %13 = vsyncpa [#allocation9], 0
    %14 = vsyncpa [#allocation4], 0
    // Predicated region
    $region2: #{tpu_custom_call.1} parent=1 // pred_check
      _
    $region3: #{tpu_custom_call.1} parent=1 // pred_check_branch
      %16 = sbr.rel (0) target = $region5
    $region4: #{tpu_custom_call.1} parent=1 // pred_region
      %s18 = ssub.s32 256, 256
      %19 = vsyncadd [#allocation3], %s18
      %s20 = sshll.u32 [#allocation2], 4
      %s21 = int_to_ptr.vmem [resolvable:$true] %s20
      %26 = dma.hbm_to_vmem [thread:$0]  %s0, 256, %s21, [#allocation3], 128, 128, 8
    $region5: #{tpu_custom_call.1} parent=1 // pred_fallthru
      _
    // Predicated region
    $region6: #{tpu_custom_call.1} parent=1 // pred_check
      _
    $region7: #{tpu_custom_call.1} parent=1 // pred_check_branch
      %28 = sbr.rel (0) target = $region9
    $region8: #{tpu_custom_call.1} parent=1 // pred_region
      %s30 = ssub.s32 256, 256
      %31 = vsyncadd [#allocation6], %s30
      %s32 = sshll.u32 [#allocation5], 4
      %s33 = int_to_ptr.vmem [resolvable:$true] %s32
      %38 = dma.hbm_to_vmem [thread:$0]  %s1, 256, %s33, [#allocation6], 128, 128, 8
    $region9: #{tpu_custom_call.1} parent=1 // pred_fallthru
      _
    // Predicated region
    $region10: #{tpu_custom_call.1} parent=1 // pred_check
      _
    $region11: #{tpu_custom_call.1} parent=1 // pred_check_branch
      %40 = sbr.rel (0) target = $region13
    $region12: #{tpu_custom_call.1} parent=1 // pred_region
      %s42 = ssub.s32 512, 512
      %43 = vsyncadd [#allocation6], %s42
      %s44 = sshll.u32 [#allocation7], 4
      %s45 = int_to_ptr.vmem [resolvable:$true] %s44
      %50 = dma.hbm_to_vmem [thread:$0]  %s2, 512, %s45, [#allocation6], 128, 128, 8
    $region13: #{tpu_custom_call.1} parent=1 // pred_fallthru
      _
    // Predicated region
    $region14: #{tpu_custom_call.1} parent=1 // pred_check
      _
    $region15: #{tpu_custom_call.1} parent=1 // pred_check_branch
      %52 = sbr.rel (0) target = $region17
    $region16: #{tpu_custom_call.1} parent=1 // pred_region
      %s54 = ssub.s32 512, 512
      %55 = vsyncadd [#allocation9], %s54
      %s56 = sshll.u32 [#allocation8], 4
      %s57 = int_to_ptr.vmem [resolvable:$true] %s56
      %62 = dma.hbm_to_vmem [thread:$0]  %s3, 512, %s57, [#allocation9], 128, 128, 8
    $region17: #{tpu_custom_call.1} parent=1 // pred_fallthru
      _
    // Predicated region
    $region18: #{tpu_custom_call.1} parent=1 // pred_check
      _
    $region19: #{tpu_custom_call.1} parent=1 // pred_check_branch
      %64 = sbr.rel (0) target = $region21
    $region20: #{tpu_custom_call.1} parent=1 // pred_region
      _
    $region21: #{tpu_custom_call.1} parent=1 // pred_fallthru
      _
    // Predicated region
    $region22: #{tpu_custom_call.1} parent=1 // pred_check
      _
    $region23: #{tpu_custom_call.1} parent=1 // pred_check_branch
      %66 = sbr.rel (0) target = $region25
    $region24: #{tpu_custom_call.1} parent=1 // pred_region
      _
    $region25: #{tpu_custom_call.1} parent=1 // pred_fallthru
      _
    // Predicated region
    $region26: #{tpu_custom_call.1} parent=1 // pred_check
      _
    $region27: #{tpu_custom_call.1} parent=1 // pred_check_branch
      %68 = sbr.rel (0) target = $region29
    $region28: #{tpu_custom_call.1} parent=1 // pred_region
      %69 = dma.done [#allocation3], 256
    $region29: #{tpu_custom_call.1} parent=1 // pred_fallthru
      _
    // Predicated region
    $region30: #{tpu_custom_call.1} parent=1 // pred_check
      _
    $region31: #{tpu_custom_call.1} parent=1 // pred_check_branch
      %71 = sbr.rel (0) target = $region33
    $region32: #{tpu_custom_call.1} parent=1 // pred_region
      %72 = dma.done [#allocation6], 256
    $region33: #{tpu_custom_call.1} parent=1 // pred_fallthru
      _
    // Predicated region
    $region34: #{tpu_custom_call.1} parent=1 // pred_check
      _
    $region35: #{tpu_custom_call.1} parent=1 // pred_check_branch
      %74 = sbr.rel (0) target = $region37
    $region36: #{tpu_custom_call.1} parent=1 // pred_region
      %75 = dma.done [#allocation6], 512
    $region37: #{tpu_custom_call.1} parent=1 // pred_fallthru
      _
    // Predicated region
    $region38: #{tpu_custom_call.1} parent=1 // pred_check
      _
    $region39: #{tpu_custom_call.1} parent=1 // pred_check_branch
      %77 = sbr.rel (0) target = $region41
    $region40: #{tpu_custom_call.1} parent=1 // pred_region
      %78 = dma.done [#allocation9], 512
    $region41: #{tpu_custom_call.1} parent=1 // pred_fallthru
      _
    %v79 = vld [vmem:[#allocation2] sm:$0xff]
    %v80 = vld [vmem:[#allocation2 + $0x8] sm:$0xff]
    %v81 = vld [vmem:[#allocation5] sm:$0xff]
    %v82 = vld [vmem:[#allocation5 + $0x8] sm:$0xff]
    %v83 = vld [vmem:[#allocation7] sm:$0xff]
    %v84 = vld [vmem:[#allocation7 + $0x8] sm:$0xff]
    %v85 = vld [vmem:[#allocation7 + $0x10] sm:$0xff]
    %v86 = vld [vmem:[#allocation7 + $0x18] sm:$0xff]
    %v87 = vld [vmem:[%s4] sm:$0x1]
    %v89 = vlaneseq
    %v90 = vshrl.u32 %v89, 7
    %v91 = vsub.s32 0, %v90
    %v92 = vrot.slane %v87, %v91
    %vm94 = vcmask 261120
    %v96 = vsel %vm94, %v79, 0
    %v99 = vsel %vm94, %v80, 0
    %101 = vmatprep.subr.mxu0 0.0
    %102 = vmatpush1.msra.mxu0 %v83
    %103 = vmatprep.subr.mxu0 0.0
    %104 = vmatpush1.msra.mxu0 %v84
    %105 = vmatprep.subr.mxu0 0.0
    %106 = vmatpush1.msra.mxu0 %v85
    %107 = vmatprep.subr.mxu0 0.0
    %108 = vmatpush1.msra.mxu0 %v86
    %109 = vmatprep.subr.mxu0 0.0
    %110 = vmatpush1.msra.mxu0 0.0
    %111 = vmatprep.subr.mxu0 0.0
    %112 = vmatpush1.msra.mxu0 0.0
    %113 = vmatprep.subr.mxu0 0.0
    %114 = vmatpush1.msra.mxu0 0.0
    %115 = vmatprep.subr.mxu0 0.0
    %116 = vmatpush1.msra.mxu0 0.0
    %117 = vmatprep.subr.mxu0 0.0
    %118 = vmatpush1.msra.mxu0 0.0
    %119 = vmatprep.subr.mxu0 0.0
    %120 = vmatpush1.msra.mxu0 0.0
    %121 = vmatprep.subr.mxu0 0.0
    %122 = vmatpush1.msra.mxu0 0.0
    %123 = vmatprep.subr.mxu0 0.0
    %124 = vmatpush1.msra.mxu0 0.0
    %125 = vmatprep.subr.mxu0 0.0
    %126 = vmatpush1.msra.mxu0 0.0
    %127 = vmatprep.subr.mxu0 0.0
    %128 = vmatpush1.msra.mxu0 0.0
    %129 = vmatprep.subr.mxu0 0.0
    %130 = vmatpush1.msra.mxu0 0.0
    %131 = vmatprep.subr.mxu0 0.0
    %132 = vmatpush1.msra.mxu0 0.0
    %133 = vmatprep.subr.mxu0 0.0
    %134 = vmatpush1.msra.mxu0 0.0
    %135 = vmatprep.subr.mxu0 0.0
    %136 = vmatpush1.msra.mxu0 0.0
    %137 = vmatprep.subr.mxu0 0.0
    %138 = vmatpush1.msra.mxu0 0.0
    %139 = vmatprep.subr.mxu0 0.0
    %140 = vmatpush1.msra.mxu0 0.0
    %141 = vmatprep.subr.mxu0 0.0
    %142 = vmatpush1.msra.mxu0 0.0
    %143 = vmatprep.subr.mxu0 0.0
    %144 = vmatpush1.msra.mxu0 0.0
    %145 = vmatprep.subr.mxu0 0.0
    %146 = vmatpush1.msra.mxu0 0.0
    %147 = vmatprep.subr.mxu0 0.0
    %148 = vmatpush1.msra.mxu0 0.0
    %149 = vmatprep.subr.mxu0 0.0
    %150 = vmatpush1.msra.mxu0 0.0
    %151 = vmatprep.subr.mxu0 0.0
    %152 = vmatpush1.msra.mxu0 0.0
    %153 = vmatprep.subr.mxu0 0.0
    %154 = vmatpush1.msra.mxu0 0.0
    %155 = vmatprep.subr.mxu0 0.0
    %156 = vmatpush1.msra.mxu0 0.0
    %157 = vmatprep.subr.mxu0 0.0
    %158 = vmatpush1.msra.mxu0 0.0
    %159 = vmatprep.subr.mxu0 0.0
    %160 = vmatpush1.msra.mxu0 0.0
    %161 = vmatprep.subr.mxu0 0.0
    %162 = vmatpush1.msra.mxu0 0.0
    %163 = vmatprep.subr.mxu0 0.0
    %164 = vmatpush1.msra.mxu0 0.0
    %165 = vmatprep.mubr.f32.mxu0 0.0
    %166 = vmatmul.mubr.f32.gmra.mrb[0].mxu0 %v96
    %v167 = vpop.f32.mrb[0].mxu0
    %v168 = vadd.f32 %v92, %v167
    %v169 = vpop.f32.mrb[0].mxu0
    %170 = vmatprep.mubr.f32.mxu0 0.0
    %171 = vmatmul.mubr.f32.gmra.mrb[0].mxu0 %v99
    %v172 = vpop.f32.mrb[0].mxu0
    %v173 = vadd.f32 %v92, %v172
    %v174 = vpop.f32.mrb[0].mxu0
    %175 = vdwg.mxu0
    %178 = vrot.lane.b32.xlu0 %v168, 120
    %v179 = vpop.permute.xlu0 %178
    %180 = vrot.lane.b32.xlu0 %v173, 120
    %v181 = vpop.permute.xlu0 %180
    %182 = vrot.lane.b32.xlu0 %v168, 112
    %v183 = vpop.permute.xlu0 %182
    %184 = vrot.lane.b32.xlu0 %v173, 112
    %v185 = vpop.permute.xlu0 %184
    %186 = vrot.lane.b32.xlu0 %v168, 104
    %v187 = vpop.permute.xlu0 %186
    %188 = vrot.lane.b32.xlu0 %v173, 104
    %v189 = vpop.permute.xlu0 %188
    %190 = vrot.lane.b32.xlu0 %v168, 96
    %v191 = vpop.permute.xlu0 %190
    %192 = vrot.lane.b32.xlu0 %v173, 96
    %v193 = vpop.permute.xlu0 %192
    %vm194 = vcmask 64512
    %v195 = vsel %vm194, %v168, 0
    %v197 = vsel %vm194, %v173, 0
    %v199 = vsel %vm194, %v191, 0
    %v201 = vsel %vm194, %v193, 0
    %203 = vmatprep.subr.mxu0 0.0
    %204 = vmatpush1.xpose.msra.mxu0 %v199
    %205 = vmatprep.subr.mxu0 0.0
    %206 = vmatpush1.xpose.msra.mxu0 %v201
    %207 = vmatprep.subr.mxu0 0.0
    %208 = vmatpush1.xpose.msra.mxu0 0.0
    %209 = vmatprep.subr.mxu0 0.0
    %210 = vmatpush1.xpose.msra.mxu0 0.0
    %211 = vmatprep.subr.mxu0 0.0
    %212 = vmatpush1.xpose.msra.mxu0 0.0
    %213 = vmatprep.subr.mxu0 0.0
    %214 = vmatpush1.xpose.msra.mxu0 0.0
    %215 = vmatprep.subr.mxu0 0.0
    %216 = vmatpush1.xpose.msra.mxu0 0.0
    %217 = vmatprep.subr.mxu0 0.0
    %218 = vmatpush1.xpose.msra.mxu0 0.0
    %219 = vmatprep.subr.mxu0 0.0
    %220 = vmatpush1.xpose.msra.mxu0 0.0
    %221 = vmatprep.subr.mxu0 0.0
    %222 = vmatpush1.xpose.msra.mxu0 0.0
    %223 = vmatprep.subr.mxu0 0.0
    %224 = vmatpush1.xpose.msra.mxu0 0.0
    %225 = vmatprep.subr.mxu0 0.0
    %226 = vmatpush1.xpose.msra.mxu0 0.0
    %227 = vmatprep.subr.mxu0 0.0
    %228 = vmatpush1.xpose.msra.mxu0 0.0
    %229 = vmatprep.subr.mxu0 0.0
    %230 = vmatpush1.xpose.msra.mxu0 0.0
    %231 = vmatprep.subr.mxu0 0.0
    %232 = vmatpush1.xpose.msra.mxu0 0.0
    %233 = vmatprep.subr.mxu0 0.0
    %234 = vmatpush1.xpose.msra.mxu0 0.0
    %235 = vmatprep.subr.mxu0 0.0
    %236 = vmatpush1.xpose.msra.mxu0 0.0
    %237 = vmatprep.subr.mxu0 0.0
    %238 = vmatpush1.xpose.msra.mxu0 0.0
    %239 = vmatprep.subr.mxu0 0.0
    %240 = vmatpush1.xpose.msra.mxu0 0.0
    %241 = vmatprep.subr.mxu0 0.0
    %242 = vmatpush1.xpose.msra.mxu0 0.0
    %243 = vmatprep.subr.mxu0 0.0
    %244 = vmatpush1.xpose.msra.mxu0 0.0
    %245 = vmatprep.subr.mxu0 0.0
    %246 = vmatpush1.xpose.msra.mxu0 0.0
    %247 = vmatprep.subr.mxu0 0.0
    %248 = vmatpush1.xpose.msra.mxu0 0.0
    %249 = vmatprep.subr.mxu0 0.0
    %250 = vmatpush1.xpose.msra.mxu0 0.0
    %251 = vmatprep.subr.mxu0 0.0
    %252 = vmatpush1.xpose.msra.mxu0 0.0
    %253 = vmatprep.subr.mxu0 0.0
    %254 = vmatpush1.xpose.msra.mxu0 0.0
    %255 = vmatprep.subr.mxu0 0.0
    %256 = vmatpush1.xpose.msra.mxu0 0.0
    %257 = vmatprep.subr.mxu0 0.0
    %258 = vmatpush1.xpose.msra.mxu0 0.0
    %259 = vmatprep.subr.mxu0 0.0
    %260 = vmatpush1.xpose.msra.mxu0 0.0
    %261 = vmatprep.subr.mxu0 0.0
    %262 = vmatpush1.xpose.msra.mxu0 0.0
    %263 = vmatprep.subr.mxu0 0.0
    %264 = vmatpush1.xpose.msra.mxu0 0.0
    %265 = vmatprep.subr.mxu0 0.0
    %266 = vmatpush1.xpose.msra.mxu0 0.0
    %267 = vmatprep.mubr.f32.mxu0 0.0
    %268 = vmatmul.mubr.f32.gmra.mrb[0].mxu0 %v195
    %v269 = vpop.f32.mrb[0].mxu0
    %v270 = vadd.f32 %v81, %v269
    %v271 = vpop.f32.mrb[0].mxu0
    %272 = vmatprep.mubr.f32.mxu0 0.0
    %273 = vmatmul.mubr.f32.gmra.mrb[0].mxu0 %v197
    %v274 = vpop.f32.mrb[0].mxu0
    %v275 = vadd.f32 %v82, %v274
    %v276 = vpop.f32.mrb[0].mxu0
    %277 = vdwg.mxu0
    %278 = vrot.lane.b32.xlu0 %v179, 96
    %v279 = vpop.permute.xlu0 %278
    %280 = vrot.lane.b32.xlu0 %v181, 96
    %v281 = vpop.permute.xlu0 %280
    %v282 = vsel %vm194, %v179, 0
    %v284 = vsel %vm194, %v181, 0
    %v286 = vsel %vm194, %v279, 0
    %v288 = vsel %vm194, %v281, 0
    %290 = vmatprep.subr.mxu0 0.0
    %291 = vmatpush1.xpose.msra.mxu0 %v286
    %292 = vmatprep.subr.mxu0 0.0
    %293 = vmatpush1.xpose.msra.mxu0 %v288
    %294 = vmatprep.subr.mxu0 0.0
    %295 = vmatpush1.xpose.msra.mxu0 0.0
    %296 = vmatprep.subr.mxu0 0.0
    %297 = vmatpush1.xpose.msra.mxu0 0.0
    %298 = vmatprep.subr.mxu0 0.0
    %299 = vmatpush1.xpose.msra.mxu0 0.0
    %300 = vmatprep.subr.mxu0 0.0
    %301 = vmatpush1.xpose.msra.mxu0 0.0
    %302 = vmatprep.subr.mxu0 0.0
    %303 = vmatpush1.xpose.msra.mxu0 0.0
    %304 = vmatprep.subr.mxu0 0.0
    %305 = vmatpush1.xpose.msra.mxu0 0.0
    %306 = vmatprep.subr.mxu0 0.0
    %307 = vmatpush1.xpose.msra.mxu0 0.0
    %308 = vmatprep.subr.mxu0 0.0
    %309 = vmatpush1.xpose.msra.mxu0 0.0
    %310 = vmatprep.subr.mxu0 0.0
    %311 = vmatpush1.xpose.msra.mxu0 0.0
    %312 = vmatprep.subr.mxu0 0.0
    %313 = vmatpush1.xpose.msra.mxu0 0.0
    %314 = vmatprep.subr.mxu0 0.0
    %315 = vmatpush1.xpose.msra.mxu0 0.0
    %316 = vmatprep.subr.mxu0 0.0
    %317 = vmatpush1.xpose.msra.mxu0 0.0
    %318 = vmatprep.subr.mxu0 0.0
    %319 = vmatpush1.xpose.msra.mxu0 0.0
    %320 = vmatprep.subr.mxu0 0.0
    %321 = vmatpush1.xpose.msra.mxu0 0.0
    %322 = vmatprep.subr.mxu0 0.0
    %323 = vmatpush1.xpose.msra.mxu0 0.0
    %324 = vmatprep.subr.mxu0 0.0
    %325 = vmatpush1.xpose.msra.mxu0 0.0
    %326 = vmatprep.subr.mxu0 0.0
    %327 = vmatpush1.xpose.msra.mxu0 0.0
    %328 = vmatprep.subr.mxu0 0.0
    %329 = vmatpush1.xpose.msra.mxu0 0.0
    %330 = vmatprep.subr.mxu0 0.0
    %331 = vmatpush1.xpose.msra.mxu0 0.0
    %332 = vmatprep.subr.mxu0 0.0
    %333 = vmatpush1.xpose.msra.mxu0 0.0
    %334 = vmatprep.subr.mxu0 0.0
    %335 = vmatpush1.xpose.msra.mxu0 0.0
    %336 = vmatprep.subr.mxu0 0.0
    %337 = vmatpush1.xpose.msra.mxu0 0.0
    %338 = vmatprep.subr.mxu0 0.0
    %339 = vmatpush1.xpose.msra.mxu0 0.0
    %340 = vmatprep.subr.mxu0 0.0
    %341 = vmatpush1.xpose.msra.mxu0 0.0
    %342 = vmatprep.subr.mxu0 0.0
    %343 = vmatpush1.xpose.msra.mxu0 0.0
    %344 = vmatprep.subr.mxu0 0.0
    %345 = vmatpush1.xpose.msra.mxu0 0.0
    %346 = vmatprep.subr.mxu0 0.0
    %347 = vmatpush1.xpose.msra.mxu0 0.0
    %348 = vmatprep.subr.mxu0 0.0
    %349 = vmatpush1.xpose.msra.mxu0 0.0
    %350 = vmatprep.subr.mxu0 0.0
    %351 = vmatpush1.xpose.msra.mxu0 0.0
    %352 = vmatprep.subr.mxu0 0.0
    %353 = vmatpush1.xpose.msra.mxu0 0.0
    %354 = vmatprep.mubr.f32.mxu0 0.0
    %355 = vmatmul.mubr.f32.gmra.mrb[0].mxu0 %v282
    %v356 = vpop.f32.mrb[0].mxu0
    %v357 = vadd.f32 %v81, %v356
    %v358 = vpop.f32.mrb[0].mxu0
    %359 = vmatprep.mubr.f32.mxu0 0.0
    %360 = vmatmul.mubr.f32.gmra.mrb[0].mxu0 %v284
    %v361 = vpop.f32.mrb[0].mxu0
    %v362 = vadd.f32 %v82, %v361
    %v363 = vpop.f32.mrb[0].mxu0
    %364 = vdwg.mxu0
    %365 = vrot.lane.b32.xlu0 %v183, 96
    %v366 = vpop.permute.xlu0 %365
    %367 = vrot.lane.b32.xlu0 %v185, 96
    %v368 = vpop.permute.xlu0 %367
    %v369 = vsel %vm194, %v183, 0
    %v371 = vsel %vm194, %v185, 0
    %v373 = vsel %vm194, %v366, 0
    %v375 = vsel %vm194, %v368, 0
    %377 = vmatprep.subr.mxu0 0.0
    %378 = vmatpush1.xpose.msra.mxu0 %v373
    %379 = vmatprep.subr.mxu0 0.0
    %380 = vmatpush1.xpose.msra.mxu0 %v375
    %381 = vmatprep.subr.mxu0 0.0
    %382 = vmatpush1.xpose.msra.mxu0 0.0
    %383 = vmatprep.subr.mxu0 0.0
    %384 = vmatpush1.xpose.msra.mxu0 0.0
    %385 = vmatprep.subr.mxu0 0.0
    %386 = vmatpush1.xpose.msra.mxu0 0.0
    %387 = vmatprep.subr.mxu0 0.0
    %388 = vmatpush1.xpose.msra.mxu0 0.0
    %389 = vmatprep.subr.mxu0 0.0
    %390 = vmatpush1.xpose.msra.mxu0 0.0
    %391 = vmatprep.subr.mxu0 0.0
    %392 = vmatpush1.xpose.msra.mxu0 0.0
    %393 = vmatprep.subr.mxu0 0.0
    %394 = vmatpush1.xpose.msra.mxu0 0.0
    %395 = vmatprep.subr.mxu0 0.0
    %396 = vmatpush1.xpose.msra.mxu0 0.0
    %397 = vmatprep.subr.mxu0 0.0
    %398 = vmatpush1.xpose.msra.mxu0 0.0
    %399 = vmatprep.subr.mxu0 0.0
    %400 = vmatpush1.xpose.msra.mxu0 0.0
    %401 = vmatprep.subr.mxu0 0.0
    %402 = vmatpush1.xpose.msra.mxu0 0.0
    %403 = vmatprep.subr.mxu0 0.0
    %404 = vmatpush1.xpose.msra.mxu0 0.0
    %405 = vmatprep.subr.mxu0 0.0
    %406 = vmatpush1.xpose.msra.mxu0 0.0
    %407 = vmatprep.subr.mxu0 0.0
    %408 = vmatpush1.xpose.msra.mxu0 0.0
    %409 = vmatprep.subr.mxu0 0.0
    %410 = vmatpush1.xpose.msra.mxu0 0.0
    %411 = vmatprep.subr.mxu0 0.0
    %412 = vmatpush1.xpose.msra.mxu0 0.0
    %413 = vmatprep.subr.mxu0 0.0
    %414 = vmatpush1.xpose.msra.mxu0 0.0
    %415 = vmatprep.subr.mxu0 0.0
    %416 = vmatpush1.xpose.msra.mxu0 0.0
    %417 = vmatprep.subr.mxu0 0.0
    %418 = vmatpush1.xpose.msra.mxu0 0.0
    %419 = vmatprep.subr.mxu0 0.0
    %420 = vmatpush1.xpose.msra.mxu0 0.0
    %421 = vmatprep.subr.mxu0 0.0
    %422 = vmatpush1.xpose.msra.mxu0 0.0
    %423 = vmatprep.subr.mxu0 0.0
    %424 = vmatpush1.xpose.msra.mxu0 0.0
    %425 = vmatprep.subr.mxu0 0.0
    %426 = vmatpush1.xpose.msra.mxu0 0.0
    %427 = vmatprep.subr.mxu0 0.0
    %428 = vmatpush1.xpose.msra.mxu0 0.0
    %429 = vmatprep.subr.mxu0 0.0
    %430 = vmatpush1.xpose.msra.mxu0 0.0
    %431 = vmatprep.subr.mxu0 0.0
    %432 = vmatpush1.xpose.msra.mxu0 0.0
    %433 = vmatprep.subr.mxu0 0.0
    %434 = vmatpush1.xpose.msra.mxu0 0.0
    %435 = vmatprep.subr.mxu0 0.0
    %436 = vmatpush1.xpose.msra.mxu0 0.0
    %437 = vmatprep.subr.mxu0 0.0
    %438 = vmatpush1.xpose.msra.mxu0 0.0
    %439 = vmatprep.subr.mxu0 0.0
    %440 = vmatpush1.xpose.msra.mxu0 0.0
    %441 = vmatprep.mubr.f32.mxu0 0.0
    %442 = vmatmul.mubr.f32.gmra.mrb[0].mxu0 %v369
    %v443 = vpop.f32.mrb[0].mxu0
    %v444 = vadd.f32 %v81, %v443
    %v445 = vpop.f32.mrb[0].mxu0
    %446 = vmatprep.mubr.f32.mxu0 0.0
    %447 = vmatmul.mubr.f32.gmra.mrb[0].mxu0 %v371
    %v448 = vpop.f32.mrb[0].mxu0
    %v449 = vadd.f32 %v82, %v448
    %v450 = vpop.f32.mrb[0].mxu0
    %451 = vdwg.mxu0
    %452 = vrot.lane.b32.xlu0 %v187, 96
    %v453 = vpop.permute.xlu0 %452
    %454 = vrot.lane.b32.xlu0 %v189, 96
    %v455 = vpop.permute.xlu0 %454
    %v456 = vsel %vm194, %v187, 0
    %v458 = vsel %vm194, %v189, 0
    %v460 = vsel %vm194, %v453, 0
    %v462 = vsel %vm194, %v455, 0
    %464 = vmatprep.subr.mxu0 0.0
    %465 = vmatpush1.xpose.msra.mxu0 %v460
    %466 = vmatprep.subr.mxu0 0.0
    %467 = vmatpush1.xpose.msra.mxu0 %v462
    %468 = vmatprep.subr.mxu0 0.0
    %469 = vmatpush1.xpose.msra.mxu0 0.0
    %470 = vmatprep.subr.mxu0 0.0
    %471 = vmatpush1.xpose.msra.mxu0 0.0
    %472 = vmatprep.subr.mxu0 0.0
    %473 = vmatpush1.xpose.msra.mxu0 0.0
    %474 = vmatprep.subr.mxu0 0.0
    %475 = vmatpush1.xpose.msra.mxu0 0.0
    %476 = vmatprep.subr.mxu0 0.0
    %477 = vmatpush1.xpose.msra.mxu0 0.0
    %478 = vmatprep.subr.mxu0 0.0
    %479 = vmatpush1.xpose.msra.mxu0 0.0
    %480 = vmatprep.subr.mxu0 0.0
    %481 = vmatpush1.xpose.msra.mxu0 0.0
    %482 = vmatprep.subr.mxu0 0.0
    %483 = vmatpush1.xpose.msra.mxu0 0.0
    %484 = vmatprep.subr.mxu0 0.0
    %485 = vmatpush1.xpose.msra.mxu0 0.0
    %486 = vmatprep.subr.mxu0 0.0
    %487 = vmatpush1.xpose.msra.mxu0 0.0
    %488 = vmatprep.subr.mxu0 0.0
    %489 = vmatpush1.xpose.msra.mxu0 0.0
    %490 = vmatprep.subr.mxu0 0.0
    %491 = vmatpush1.xpose.msra.mxu0 0.0
    %492 = vmatprep.subr.mxu0 0.0
    %493 = vmatpush1.xpose.msra.mxu0 0.0
    %494 = vmatprep.subr.mxu0 0.0
    %495 = vmatpush1.xpose.msra.mxu0 0.0
    %496 = vmatprep.subr.mxu0 0.0
    %497 = vmatpush1.xpose.msra.mxu0 0.0
    %498 = vmatprep.subr.mxu0 0.0
    %499 = vmatpush1.xpose.msra.mxu0 0.0
    %500 = vmatprep.subr.mxu0 0.0
    %501 = vmatpush1.xpose.msra.mxu0 0.0
    %502 = vmatprep.subr.mxu0 0.0
    %503 = vmatpush1.xpose.msra.mxu0 0.0
    %504 = vmatprep.subr.mxu0 0.0
    %505 = vmatpush1.xpose.msra.mxu0 0.0
    %506 = vmatprep.subr.mxu0 0.0
    %507 = vmatpush1.xpose.msra.mxu0 0.0
    %508 = vmatprep.subr.mxu0 0.0
    %509 = vmatpush1.xpose.msra.mxu0 0.0
    %510 = vmatprep.subr.mxu0 0.0
    %511 = vmatpush1.xpose.msra.mxu0 0.0
    %512 = vmatprep.subr.mxu0 0.0
    %513 = vmatpush1.xpose.msra.mxu0 0.0
    %514 = vmatprep.subr.mxu0 0.0
    %515 = vmatpush1.xpose.msra.mxu0 0.0
    %516 = vmatprep.subr.mxu0 0.0
    %517 = vmatpush1.xpose.msra.mxu0 0.0
    %518 = vmatprep.subr.mxu0 0.0
    %519 = vmatpush1.xpose.msra.mxu0 0.0
    %520 = vmatprep.subr.mxu0 0.0
    %521 = vmatpush1.xpose.msra.mxu0 0.0
    %522 = vmatprep.subr.mxu0 0.0
    %523 = vmatpush1.xpose.msra.mxu0 0.0
    %524 = vmatprep.subr.mxu0 0.0
    %525 = vmatpush1.xpose.msra.mxu0 0.0
    %526 = vmatprep.subr.mxu0 0.0
    %527 = vmatpush1.xpose.msra.mxu0 0.0
    %528 = vmatprep.mubr.f32.mxu0 0.0
    %529 = vmatmul.mubr.f32.gmra.mrb[0].mxu0 %v456
    %v530 = vpop.f32.mrb[0].mxu0
    %v531 = vadd.f32 %v81, %v530
    %v532 = vpop.f32.mrb[0].mxu0
    %533 = vmatprep.mubr.f32.mxu0 0.0
    %534 = vmatmul.mubr.f32.gmra.mrb[0].mxu0 %v458
    %v535 = vpop.f32.mrb[0].mxu0
    %v536 = vadd.f32 %v82, %v535
    %v537 = vpop.f32.mrb[0].mxu0
    %538 = vdwg.mxu0
    %vm539 = vcmask 130048
    %v540 = vsel %vm539, %v270, -inf
    %541 = vmax.xlane.f32.xlu0 %v540
    %v542 = vpop.xlane.xlu0 %541
    %v543 = vsel %vm539, %v275, -inf
    %544 = vmax.xlane.f32.xlu0 %v543
    %v545 = vpop.xlane.xlu0 %544
    %v546 = vsel %vm539, %v357, -inf
    %547 = vmax.xlane.f32.xlu0 %v546
    %v548 = vpop.xlane.xlu0 %547
    %v549 = vsel %vm539, %v362, -inf
    %550 = vmax.xlane.f32.xlu0 %v549
    %v551 = vpop.xlane.xlu0 %550
    %v552 = vsel %vm539, %v444, -inf
    %553 = vmax.xlane.f32.xlu0 %v552
    %v554 = vpop.xlane.xlu0 %553
    %v555 = vsel %vm539, %v449, -inf
    %556 = vmax.xlane.f32.xlu0 %v555
    %v557 = vpop.xlane.xlu0 %556
    %v558 = vsel %vm539, %v531, -inf
    %559 = vmax.xlane.f32.xlu0 %v558
    %v560 = vpop.xlane.xlu0 %559
    %v561 = vsel %vm539, %v536, -inf
    %562 = vmax.xlane.f32.xlu0 %v561
    %v563 = vpop.xlane.xlu0 %562
    %v564 = vsub.f32 %v270, %v542
    %v565 = vsub.f32 %v275, %v545
    %v566 = vsub.f32 %v357, %v548
    %v567 = vsub.f32 %v362, %v551
    %v568 = vsub.f32 %v444, %v554
    %v569 = vsub.f32 %v449, %v557
    %v570 = vsub.f32 %v531, %v560
    %v571 = vsub.f32 %v536, %v563
    %v572 = vmul.f32 %v564, 1.442695
    %v573 = vpow.pop %v572
    %v574 = vmul.f32 %v565, 1.442695
    %v575 = vpow.pop %v574
    %v576 = vmul.f32 %v566, 1.442695
    %v577 = vpow.pop %v576
    %v578 = vmul.f32 %v567, 1.442695
    %v579 = vpow.pop %v578
    %v580 = vmul.f32 %v568, 1.442695
    %v581 = vpow.pop %v580
    %v582 = vmul.f32 %v569, 1.442695
    %v583 = vpow.pop %v582
    %v584 = vmul.f32 %v570, 1.442695
    %v585 = vpow.pop %v584
    %v586 = vmul.f32 %v571, 1.442695
    %v587 = vpow.pop %v586
    %v588 = vsel %vm539, %v573, 0.0
    %589 = vadd.xlane.f32.xlu0 %v588
    %v590 = vpop.xlane.xlu0 %589
    %v591 = vsel %vm539, %v575, 0.0
    %592 = vadd.xlane.f32.xlu0 %v591
    %v593 = vpop.xlane.xlu0 %592
    %v594 = vsel %vm539, %v577, 0.0
    %595 = vadd.xlane.f32.xlu0 %v594
    %v596 = vpop.xlane.xlu0 %595
    %v597 = vsel %vm539, %v579, 0.0
    %598 = vadd.xlane.f32.xlu0 %v597
    %v599 = vpop.xlane.xlu0 %598
    %v600 = vsel %vm539, %v581, 0.0
    %601 = vadd.xlane.f32.xlu0 %v600
    %v602 = vpop.xlane.xlu0 %601
    %v603 = vsel %vm539, %v583, 0.0
    %604 = vadd.xlane.f32.xlu0 %v603
    %v605 = vpop.xlane.xlu0 %604
    %v606 = vsel %vm539, %v585, 0.0
    %607 = vadd.xlane.f32.xlu0 %v606
    %v608 = vpop.xlane.xlu0 %607
    %v609 = vsel %vm539, %v587, 0.0
    %610 = vadd.xlane.f32.xlu0 %v609
    %v611 = vpop.xlane.xlu0 %610
    %v612 = vrcp.pop %v590
    %v613 = vrcp.pop %v593
    %v614 = vrcp.pop %v596
    %v615 = vrcp.pop %v599
    %v616 = vrcp.pop %v602
    %v617 = vrcp.pop %v605
    %v618 = vrcp.pop %v608
    %v619 = vrcp.pop %v611
    %v620 = vmul.f32 %v573, %v612
    %v621 = vmul.f32 %v575, %v613
    %v622 = vmul.f32 %v577, %v614
    %v623 = vmul.f32 %v579, %v615
    %v624 = vmul.f32 %v581, %v616
    %v625 = vmul.f32 %v583, %v617
    %v626 = vmul.f32 %v585, %v618
    %v627 = vmul.f32 %v587, %v619
    %628 = vrot.lane.b32.xlu0 %v168, 64
    %v629 = vpop.permute.xlu0 %628
    %630 = vrot.lane.b32.xlu0 %v173, 64
    %v631 = vpop.permute.xlu0 %630
    %v635 = vsel %vm539, %v620, 0
    %v638 = vsel %vm539, %v621, 0
    %640 = vmatprep.subr.mxu0 0.0
    %641 = vmatpush1.msra.mxu0 %v629
    %642 = vmatprep.subr.mxu0 0.0
    %643 = vmatpush1.msra.mxu0 %v631
    %644 = vmatprep.subr.mxu0 0.0
    %645 = vmatpush1.msra.mxu0 0.0
    %646 = vmatprep.subr.mxu0 0.0
    %647 = vmatpush1.msra.mxu0 0.0
    %648 = vmatprep.subr.mxu0 0.0
    %649 = vmatpush1.msra.mxu0 0.0
    %650 = vmatprep.subr.mxu0 0.0
    %651 = vmatpush1.msra.mxu0 0.0
    %652 = vmatprep.subr.mxu0 0.0
    %653 = vmatpush1.msra.mxu0 0.0
    %654 = vmatprep.subr.mxu0 0.0
    %655 = vmatpush1.msra.mxu0 0.0
    %656 = vmatprep.subr.mxu0 0.0
    %657 = vmatpush1.msra.mxu0 0.0
    %658 = vmatprep.subr.mxu0 0.0
    %659 = vmatpush1.msra.mxu0 0.0
    %660 = vmatprep.subr.mxu0 0.0
    %661 = vmatpush1.msra.mxu0 0.0
    %662 = vmatprep.subr.mxu0 0.0
    %663 = vmatpush1.msra.mxu0 0.0
    %664 = vmatprep.subr.mxu0 0.0
    %665 = vmatpush1.msra.mxu0 0.0
    %666 = vmatprep.subr.mxu0 0.0
    %667 = vmatpush1.msra.mxu0 0.0
    %668 = vmatprep.subr.mxu0 0.0
    %669 = vmatpush1.msra.mxu0 0.0
    %670 = vmatprep.subr.mxu0 0.0
    %671 = vmatpush1.msra.mxu0 0.0
    %672 = vmatprep.subr.mxu0 0.0
    %673 = vmatpush1.msra.mxu0 0.0
    %674 = vmatprep.subr.mxu0 0.0
    %675 = vmatpush1.msra.mxu0 0.0
    %676 = vmatprep.subr.mxu0 0.0
    %677 = vmatpush1.msra.mxu0 0.0
    %678 = vmatprep.subr.mxu0 0.0
    %679 = vmatpush1.msra.mxu0 0.0
    %680 = vmatprep.subr.mxu0 0.0
    %681 = vmatpush1.msra.mxu0 0.0
    %682 = vmatprep.subr.mxu0 0.0
    %683 = vmatpush1.msra.mxu0 0.0
    %684 = vmatprep.subr.mxu0 0.0
    %685 = vmatpush1.msra.mxu0 0.0
    %686 = vmatprep.subr.mxu0 0.0
    %687 = vmatpush1.msra.mxu0 0.0
    %688 = vmatprep.subr.mxu0 0.0
    %689 = vmatpush1.msra.mxu0 0.0
    %690 = vmatprep.subr.mxu0 0.0
    %691 = vmatpush1.msra.mxu0 0.0
    %692 = vmatprep.subr.mxu0 0.0
    %693 = vmatpush1.msra.mxu0 0.0
    %694 = vmatprep.subr.mxu0 0.0
    %695 = vmatpush1.msra.mxu0 0.0
    %696 = vmatprep.subr.mxu0 0.0
    %697 = vmatpush1.msra.mxu0 0.0
    %698 = vmatprep.subr.mxu0 0.0
    %699 = vmatpush1.msra.mxu0 0.0
    %700 = vmatprep.subr.mxu0 0.0
    %701 = vmatpush1.msra.mxu0 0.0
    %702 = vmatprep.subr.mxu0 0.0
    %703 = vmatpush1.msra.mxu0 0.0
    %704 = vmatprep.mubr.f32.mxu0 0.0
    %705 = vmatmul.mubr.f32.gmra.mrb[0].mxu0 %v635
    %v706 = vpop.f32.mrb[0].mxu0
    %v707 = vadd.f32 0.0, %v706
    %v708 = vpop.f32.mrb[0].mxu0
    %709 = vmatprep.mubr.f32.mxu0 0.0
    %710 = vmatmul.mubr.f32.gmra.mrb[0].mxu0 %v638
    %v711 = vpop.f32.mrb[0].mxu0
    %v712 = vadd.f32 0.0, %v711
    %v713 = vpop.f32.mrb[0].mxu0
    %714 = vdwg.mxu0
    %715 = vrot.lane.b32.xlu0 %v179, 64
    %v716 = vpop.permute.xlu0 %715
    %717 = vrot.lane.b32.xlu0 %v181, 64
    %v718 = vpop.permute.xlu0 %717
    %v722 = vsel %vm539, %v622, 0
    %v725 = vsel %vm539, %v623, 0
    %727 = vmatprep.subr.mxu0 0.0
    %728 = vmatpush1.msra.mxu0 %v716
    %729 = vmatprep.subr.mxu0 0.0
    %730 = vmatpush1.msra.mxu0 %v718
    %731 = vmatprep.subr.mxu0 0.0
    %732 = vmatpush1.msra.mxu0 0.0
    %733 = vmatprep.subr.mxu0 0.0
    %734 = vmatpush1.msra.mxu0 0.0
    %735 = vmatprep.subr.mxu0 0.0
    %736 = vmatpush1.msra.mxu0 0.0
    %737 = vmatprep.subr.mxu0 0.0
    %738 = vmatpush1.msra.mxu0 0.0
    %739 = vmatprep.subr.mxu0 0.0
    %740 = vmatpush1.msra.mxu0 0.0
    %741 = vmatprep.subr.mxu0 0.0
    %742 = vmatpush1.msra.mxu0 0.0
    %743 = vmatprep.subr.mxu0 0.0
    %744 = vmatpush1.msra.mxu0 0.0
    %745 = vmatprep.subr.mxu0 0.0
    %746 = vmatpush1.msra.mxu0 0.0
    %747 = vmatprep.subr.mxu0 0.0
    %748 = vmatpush1.msra.mxu0 0.0
    %749 = vmatprep.subr.mxu0 0.0
    %750 = vmatpush1.msra.mxu0 0.0
    %751 = vmatprep.subr.mxu0 0.0
    %752 = vmatpush1.msra.mxu0 0.0
    %753 = vmatprep.subr.mxu0 0.0
    %754 = vmatpush1.msra.mxu0 0.0
    %755 = vmatprep.subr.mxu0 0.0
    %756 = vmatpush1.msra.mxu0 0.0
    %757 = vmatprep.subr.mxu0 0.0
    %758 = vmatpush1.msra.mxu0 0.0
    %759 = vmatprep.subr.mxu0 0.0
    %760 = vmatpush1.msra.mxu0 0.0
    %761 = vmatprep.subr.mxu0 0.0
    %762 = vmatpush1.msra.mxu0 0.0
    %763 = vmatprep.subr.mxu0 0.0
    %764 = vmatpush1.msra.mxu0 0.0
    %765 = vmatprep.subr.mxu0 0.0
    %766 = vmatpush1.msra.mxu0 0.0
    %767 = vmatprep.subr.mxu0 0.0
    %768 = vmatpush1.msra.mxu0 0.0
    %769 = vmatprep.subr.mxu0 0.0
    %770 = vmatpush1.msra.mxu0 0.0
    %771 = vmatprep.subr.mxu0 0.0
    %772 = vmatpush1.msra.mxu0 0.0
    %773 = vmatprep.subr.mxu0 0.0
    %774 = vmatpush1.msra.mxu0 0.0
    %775 = vmatprep.subr.mxu0 0.0
    %776 = vmatpush1.msra.mxu0 0.0
    %777 = vmatprep.subr.mxu0 0.0
    %778 = vmatpush1.msra.mxu0 0.0
    %779 = vmatprep.subr.mxu0 0.0
    %780 = vmatpush1.msra.mxu0 0.0
    %781 = vmatprep.subr.mxu0 0.0
    %782 = vmatpush1.msra.mxu0 0.0
    %783 = vmatprep.subr.mxu0 0.0
    %784 = vmatpush1.msra.mxu0 0.0
    %785 = vmatprep.subr.mxu0 0.0
    %786 = vmatpush1.msra.mxu0 0.0
    %787 = vmatprep.subr.mxu0 0.0
    %788 = vmatpush1.msra.mxu0 0.0
    %789 = vmatprep.subr.mxu0 0.0
    %790 = vmatpush1.msra.mxu0 0.0
    %791 = vmatprep.mubr.f32.mxu0 0.0
    %792 = vmatmul.mubr.f32.gmra.mrb[0].mxu0 %v722
    %v793 = vpop.f32.mrb[0].mxu0
    %v794 = vadd.f32 0.0, %v793
    %v795 = vpop.f32.mrb[0].mxu0
    %796 = vmatprep.mubr.f32.mxu0 0.0
    %797 = vmatmul.mubr.f32.gmra.mrb[0].mxu0 %v725
    %v798 = vpop.f32.mrb[0].mxu0
    %v799 = vadd.f32 0.0, %v798
    %v800 = vpop.f32.mrb[0].mxu0
    %801 = vdwg.mxu0
    %802 = vrot.lane.b32.xlu0 %v183, 64
    %v803 = vpop.permute.xlu0 %802
    %804 = vrot.lane.b32.xlu0 %v185, 64
    %v805 = vpop.permute.xlu0 %804
    %v809 = vsel %vm539, %v624, 0
    %v812 = vsel %vm539, %v625, 0
    %814 = vmatprep.subr.mxu0 0.0
    %815 = vmatpush1.msra.mxu0 %v803
    %816 = vmatprep.subr.mxu0 0.0
    %817 = vmatpush1.msra.mxu0 %v805
    %818 = vmatprep.subr.mxu0 0.0
    %819 = vmatpush1.msra.mxu0 0.0
    %820 = vmatprep.subr.mxu0 0.0
    %821 = vmatpush1.msra.mxu0 0.0
    %822 = vmatprep.subr.mxu0 0.0
    %823 = vmatpush1.msra.mxu0 0.0
    %824 = vmatprep.subr.mxu0 0.0
    %825 = vmatpush1.msra.mxu0 0.0
    %826 = vmatprep.subr.mxu0 0.0
    %827 = vmatpush1.msra.mxu0 0.0
    %828 = vmatprep.subr.mxu0 0.0
    %829 = vmatpush1.msra.mxu0 0.0
    %830 = vmatprep.subr.mxu0 0.0
    %831 = vmatpush1.msra.mxu0 0.0
    %832 = vmatprep.subr.mxu0 0.0
    %833 = vmatpush1.msra.mxu0 0.0
    %834 = vmatprep.subr.mxu0 0.0
    %835 = vmatpush1.msra.mxu0 0.0
    %836 = vmatprep.subr.mxu0 0.0
    %837 = vmatpush1.msra.mxu0 0.0
    %838 = vmatprep.subr.mxu0 0.0
    %839 = vmatpush1.msra.mxu0 0.0
    %840 = vmatprep.subr.mxu0 0.0
    %841 = vmatpush1.msra.mxu0 0.0
    %842 = vmatprep.subr.mxu0 0.0
    %843 = vmatpush1.msra.mxu0 0.0
    %844 = vmatprep.subr.mxu0 0.0
    %845 = vmatpush1.msra.mxu0 0.0
    %846 = vmatprep.subr.mxu0 0.0
    %847 = vmatpush1.msra.mxu0 0.0
    %848 = vmatprep.subr.mxu0 0.0
    %849 = vmatpush1.msra.mxu0 0.0
    %850 = vmatprep.subr.mxu0 0.0
    %851 = vmatpush1.msra.mxu0 0.0
    %852 = vmatprep.subr.mxu0 0.0
    %853 = vmatpush1.msra.mxu0 0.0
    %854 = vmatprep.subr.mxu0 0.0
    %855 = vmatpush1.msra.mxu0 0.0
    %856 = vmatprep.subr.mxu0 0.0
    %857 = vmatpush1.msra.mxu0 0.0
    %858 = vmatprep.subr.mxu0 0.0
    %859 = vmatpush1.msra.mxu0 0.0
    %860 = vmatprep.subr.mxu0 0.0
    %861 = vmatpush1.msra.mxu0 0.0
    %862 = vmatprep.subr.mxu0 0.0
    %863 = vmatpush1.msra.mxu0 0.0
    %864 = vmatprep.subr.mxu0 0.0
    %865 = vmatpush1.msra.mxu0 0.0
    %866 = vmatprep.subr.mxu0 0.0
    %867 = vmatpush1.msra.mxu0 0.0
    %868 = vmatprep.subr.mxu0 0.0
    %869 = vmatpush1.msra.mxu0 0.0
    %870 = vmatprep.subr.mxu0 0.0
    %871 = vmatpush1.msra.mxu0 0.0
    %872 = vmatprep.subr.mxu0 0.0
    %873 = vmatpush1.msra.mxu0 0.0
    %874 = vmatprep.subr.mxu0 0.0
    %875 = vmatpush1.msra.mxu0 0.0
    %876 = vmatprep.subr.mxu0 0.0
    %877 = vmatpush1.msra.mxu0 0.0
    %878 = vmatprep.mubr.f32.mxu0 0.0
    %879 = vmatmul.mubr.f32.gmra.mrb[0].mxu0 %v809
    %v880 = vpop.f32.mrb[0].mxu0
    %v881 = vadd.f32 0.0, %v880
    %v882 = vpop.f32.mrb[0].mxu0
    %883 = vmatprep.mubr.f32.mxu0 0.0
    %884 = vmatmul.mubr.f32.gmra.mrb[0].mxu0 %v812
    %v885 = vpop.f32.mrb[0].mxu0
    %v886 = vadd.f32 0.0, %v885
    %v887 = vpop.f32.mrb[0].mxu0
    %888 = vdwg.mxu0
    %889 = vrot.lane.b32.xlu0 %v187, 64
    %v890 = vpop.permute.xlu0 %889
    %891 = vrot.lane.b32.xlu0 %v189, 64
    %v892 = vpop.permute.xlu0 %891
    %v896 = vsel %vm539, %v626, 0
    %v899 = vsel %vm539, %v627, 0
    %901 = vmatprep.subr.mxu0 0.0
    %902 = vmatpush1.msra.mxu0 %v890
    %903 = vmatprep.subr.mxu0 0.0
    %904 = vmatpush1.msra.mxu0 %v892
    %905 = vmatprep.subr.mxu0 0.0
    %906 = vmatpush1.msra.mxu0 0.0
    %907 = vmatprep.subr.mxu0 0.0
    %908 = vmatpush1.msra.mxu0 0.0
    %909 = vmatprep.subr.mxu0 0.0
    %910 = vmatpush1.msra.mxu0 0.0
    %911 = vmatprep.subr.mxu0 0.0
    %912 = vmatpush1.msra.mxu0 0.0
    %913 = vmatprep.subr.mxu0 0.0
    %914 = vmatpush1.msra.mxu0 0.0
    %915 = vmatprep.subr.mxu0 0.0
    %916 = vmatpush1.msra.mxu0 0.0
    %917 = vmatprep.subr.mxu0 0.0
    %918 = vmatpush1.msra.mxu0 0.0
    %919 = vmatprep.subr.mxu0 0.0
    %920 = vmatpush1.msra.mxu0 0.0
    %921 = vmatprep.subr.mxu0 0.0
    %922 = vmatpush1.msra.mxu0 0.0
    %923 = vmatprep.subr.mxu0 0.0
    %924 = vmatpush1.msra.mxu0 0.0
    %925 = vmatprep.subr.mxu0 0.0
    %926 = vmatpush1.msra.mxu0 0.0
    %927 = vmatprep.subr.mxu0 0.0
    %928 = vmatpush1.msra.mxu0 0.0
    %929 = vmatprep.subr.mxu0 0.0
    %930 = vmatpush1.msra.mxu0 0.0
    %931 = vmatprep.subr.mxu0 0.0
    %932 = vmatpush1.msra.mxu0 0.0
    %933 = vmatprep.subr.mxu0 0.0
    %934 = vmatpush1.msra.mxu0 0.0
    %935 = vmatprep.subr.mxu0 0.0
    %936 = vmatpush1.msra.mxu0 0.0
    %937 = vmatprep.subr.mxu0 0.0
    %938 = vmatpush1.msra.mxu0 0.0
    %939 = vmatprep.subr.mxu0 0.0
    %940 = vmatpush1.msra.mxu0 0.0
    %941 = vmatprep.subr.mxu0 0.0
    %942 = vmatpush1.msra.mxu0 0.0
    %943 = vmatprep.subr.mxu0 0.0
    %944 = vmatpush1.msra.mxu0 0.0
    %945 = vmatprep.subr.mxu0 0.0
    %946 = vmatpush1.msra.mxu0 0.0
    %947 = vmatprep.subr.mxu0 0.0
    %948 = vmatpush1.msra.mxu0 0.0
    %949 = vmatprep.subr.mxu0 0.0
    %950 = vmatpush1.msra.mxu0 0.0
    %951 = vmatprep.subr.mxu0 0.0
    %952 = vmatpush1.msra.mxu0 0.0
    %953 = vmatprep.subr.mxu0 0.0
    %954 = vmatpush1.msra.mxu0 0.0
    %955 = vmatprep.subr.mxu0 0.0
    %956 = vmatpush1.msra.mxu0 0.0
    %957 = vmatprep.subr.mxu0 0.0
    %958 = vmatpush1.msra.mxu0 0.0
    %959 = vmatprep.subr.mxu0 0.0
    %960 = vmatpush1.msra.mxu0 0.0
    %961 = vmatprep.subr.mxu0 0.0
    %962 = vmatpush1.msra.mxu0 0.0
    %963 = vmatprep.subr.mxu0 0.0
    %964 = vmatpush1.msra.mxu0 0.0
    %965 = vmatprep.mubr.f32.mxu0 0.0
    %966 = vmatmul.mubr.f32.gmra.mrb[0].mxu0 %v896
    %v967 = vpop.f32.mrb[0].mxu0
    %v968 = vadd.f32 0.0, %v967
    %v969 = vpop.f32.mrb[0].mxu0
    %970 = vmatprep.mubr.f32.mxu0 0.0
    %971 = vmatmul.mubr.f32.gmra.mrb[0].mxu0 %v899
    %v972 = vpop.f32.mrb[0].mxu0
    %v973 = vadd.f32 0.0, %v972
    %v974 = vpop.f32.mrb[0].mxu0
    %975 = vdwg.mxu0
    %v976 = vld [vmem:[#allocation8] sm:$0xff]
    %v977 = vld [vmem:[#allocation8 + $0x8] sm:$0xff]
    %v978 = vld [vmem:[#allocation8 + $0x10] sm:$0xff]
    %v979 = vld [vmem:[#allocation8 + $0x18] sm:$0xff]
    %v981 = vsel %vm194, %v707, 0
    %v984 = vsel %vm194, %v712, 0
    %986 = vmatprep.subr.mxu0 0.0
    %987 = vmatpush1.msra.mxu0 %v976
    %988 = vmatprep.subr.mxu0 0.0
    %989 = vmatpush1.msra.mxu0 0.0
    %990 = vmatprep.subr.mxu0 0.0
    %991 = vmatpush1.msra.mxu0 0.0
    %992 = vmatprep.subr.mxu0 0.0
    %993 = vmatpush1.msra.mxu0 0.0
    %994 = vmatprep.subr.mxu0 0.0
    %995 = vmatpush1.msra.mxu0 0.0
    %996 = vmatprep.subr.mxu0 0.0
    %997 = vmatpush1.msra.mxu0 0.0
    %998 = vmatprep.subr.mxu0 0.0
    %999 = vmatpush1.msra.mxu0 0.0
    %1000 = vmatprep.subr.mxu0 0.0
    %1001 = vmatpush1.msra.mxu0 0.0
    %1002 = vmatprep.subr.mxu0 0.0
    %1003 = vmatpush1.msra.mxu0 0.0
    %1004 = vmatprep.subr.mxu0 0.0
    %1005 = vmatpush1.msra.mxu0 0.0
    %1006 = vmatprep.subr.mxu0 0.0
    %1007 = vmatpush1.msra.mxu0 0.0
    %1008 = vmatprep.subr.mxu0 0.0
    %1009 = vmatpush1.msra.mxu0 0.0
    %1010 = vmatprep.subr.mxu0 0.0
    %1011 = vmatpush1.msra.mxu0 0.0
    %1012 = vmatprep.subr.mxu0 0.0
    %1013 = vmatpush1.msra.mxu0 0.0
    %1014 = vmatprep.subr.mxu0 0.0
    %1015 = vmatpush1.msra.mxu0 0.0
    %1016 = vmatprep.subr.mxu0 0.0
    %1017 = vmatpush1.msra.mxu0 0.0
    %1018 = vmatprep.subr.mxu0 0.0
    %1019 = vmatpush1.msra.mxu0 0.0
    %1020 = vmatprep.subr.mxu0 0.0
    %1021 = vmatpush1.msra.mxu0 0.0
    %1022 = vmatprep.subr.mxu0 0.0
    %1023 = vmatpush1.msra.mxu0 0.0
    %1024 = vmatprep.subr.mxu0 0.0
    %1025 = vmatpush1.msra.mxu0 0.0
    %1026 = vmatprep.subr.mxu0 0.0
    %1027 = vmatpush1.msra.mxu0 0.0
    %1028 = vmatprep.subr.mxu0 0.0
    %1029 = vmatpush1.msra.mxu0 0.0
    %1030 = vmatprep.subr.mxu0 0.0
    %1031 = vmatpush1.msra.mxu0 0.0
    %1032 = vmatprep.subr.mxu0 0.0
    %1033 = vmatpush1.msra.mxu0 0.0
    %1034 = vmatprep.subr.mxu0 0.0
    %1035 = vmatpush1.msra.mxu0 0.0
    %1036 = vmatprep.subr.mxu0 0.0
    %1037 = vmatpush1.msra.mxu0 0.0
    %1038 = vmatprep.subr.mxu0 0.0
    %1039 = vmatpush1.msra.mxu0 0.0
    %1040 = vmatprep.subr.mxu0 0.0
    %1041 = vmatpush1.msra.mxu0 0.0
    %1042 = vmatprep.subr.mxu0 0.0
    %1043 = vmatpush1.msra.mxu0 0.0
    %1044 = vmatprep.subr.mxu0 0.0
    %1045 = vmatpush1.msra.mxu0 0.0
    %1046 = vmatprep.subr.mxu0 0.0
    %1047 = vmatpush1.msra.mxu0 0.0
    %1048 = vmatprep.subr.mxu0 0.0
    %1049 = vmatpush1.msra.mxu0 0.0
    %1050 = vmatprep.mubr.f32.mxu0 0.0
    %1051 = vmatmul.mubr.f32.gmra.mrb[0].mxu0 %v981
    %v1052 = vpop.f32.mrb[0].mxu0
    %v1053 = vadd.f32 0.0, %v1052
    %v1054 = vpop.f32.mrb[0].mxu0
    %1055 = vmatprep.mubr.f32.mxu0 0.0
    %1056 = vmatmul.mubr.f32.gmra.mrb[0].mxu0 %v984
    %v1057 = vpop.f32.mrb[0].mxu0
    %v1058 = vadd.f32 0.0, %v1057
    %v1059 = vpop.f32.mrb[0].mxu0
    %1060 = vdwg.mxu0
    %v1062 = vsel %vm194, %v794, 0
    %v1065 = vsel %vm194, %v799, 0
    %1067 = vmatprep.subr.mxu0 0.0
    %1068 = vmatpush1.msra.mxu0 %v977
    %1069 = vmatprep.subr.mxu0 0.0
    %1070 = vmatpush1.msra.mxu0 0.0
    %1071 = vmatprep.subr.mxu0 0.0
    %1072 = vmatpush1.msra.mxu0 0.0
    %1073 = vmatprep.subr.mxu0 0.0
    %1074 = vmatpush1.msra.mxu0 0.0
    %1075 = vmatprep.subr.mxu0 0.0
    %1076 = vmatpush1.msra.mxu0 0.0
    %1077 = vmatprep.subr.mxu0 0.0
    %1078 = vmatpush1.msra.mxu0 0.0
    %1079 = vmatprep.subr.mxu0 0.0
    %1080 = vmatpush1.msra.mxu0 0.0
    %1081 = vmatprep.subr.mxu0 0.0
    %1082 = vmatpush1.msra.mxu0 0.0
    %1083 = vmatprep.subr.mxu0 0.0
    %1084 = vmatpush1.msra.mxu0 0.0
    %1085 = vmatprep.subr.mxu0 0.0
    %1086 = vmatpush1.msra.mxu0 0.0
    %1087 = vmatprep.subr.mxu0 0.0
    %1088 = vmatpush1.msra.mxu0 0.0
    %1089 = vmatprep.subr.mxu0 0.0
    %1090 = vmatpush1.msra.mxu0 0.0
    %1091 = vmatprep.subr.mxu0 0.0
    %1092 = vmatpush1.msra.mxu0 0.0
    %1093 = vmatprep.subr.mxu0 0.0
    %1094 = vmatpush1.msra.mxu0 0.0
    %1095 = vmatprep.subr.mxu0 0.0
    %1096 = vmatpush1.msra.mxu0 0.0
    %1097 = vmatprep.subr.mxu0 0.0
    %1098 = vmatpush1.msra.mxu0 0.0
    %1099 = vmatprep.subr.mxu0 0.0
    %1100 = vmatpush1.msra.mxu0 0.0
    %1101 = vmatprep.subr.mxu0 0.0
    %1102 = vmatpush1.msra.mxu0 0.0
    %1103 = vmatprep.subr.mxu0 0.0
    %1104 = vmatpush1.msra.mxu0 0.0
    %1105 = vmatprep.subr.mxu0 0.0
    %1106 = vmatpush1.msra.mxu0 0.0
    %1107 = vmatprep.subr.mxu0 0.0
    %1108 = vmatpush1.msra.mxu0 0.0
    %1109 = vmatprep.subr.mxu0 0.0
    %1110 = vmatpush1.msra.mxu0 0.0
    %1111 = vmatprep.subr.mxu0 0.0
    %1112 = vmatpush1.msra.mxu0 0.0
    %1113 = vmatprep.subr.mxu0 0.0
    %1114 = vmatpush1.msra.mxu0 0.0
    %1115 = vmatprep.subr.mxu0 0.0
    %1116 = vmatpush1.msra.mxu0 0.0
    %1117 = vmatprep.subr.mxu0 0.0
    %1118 = vmatpush1.msra.mxu0 0.0
    %1119 = vmatprep.subr.mxu0 0.0
    %1120 = vmatpush1.msra.mxu0 0.0
    %1121 = vmatprep.subr.mxu0 0.0
    %1122 = vmatpush1.msra.mxu0 0.0
    %1123 = vmatprep.subr.mxu0 0.0
    %1124 = vmatpush1.msra.mxu0 0.0
    %1125 = vmatprep.subr.mxu0 0.0
    %1126 = vmatpush1.msra.mxu0 0.0
    %1127 = vmatprep.subr.mxu0 0.0
    %1128 = vmatpush1.msra.mxu0 0.0
    %1129 = vmatprep.subr.mxu0 0.0
    %1130 = vmatpush1.msra.mxu0 0.0
    %1131 = vmatprep.mubr.f32.mxu0 0.0
    %1132 = vmatmul.mubr.f32.gmra.mrb[0].mxu0 %v1062
    %v1133 = vpop.f32.mrb[0].mxu0
    %v1134 = vadd.f32 0.0, %v1133
    %v1135 = vpop.f32.mrb[0].mxu0
    %1136 = vmatprep.mubr.f32.mxu0 0.0
    %1137 = vmatmul.mubr.f32.gmra.mrb[0].mxu0 %v1065
    %v1138 = vpop.f32.mrb[0].mxu0
    %v1139 = vadd.f32 0.0, %v1138
    %v1140 = vpop.f32.mrb[0].mxu0
    %1141 = vdwg.mxu0
    %v1143 = vsel %vm194, %v881, 0
    %v1146 = vsel %vm194, %v886, 0
    %1148 = vmatprep.subr.mxu0 0.0
    %1149 = vmatpush1.msra.mxu0 %v978
    %1150 = vmatprep.subr.mxu0 0.0
    %1151 = vmatpush1.msra.mxu0 0.0
    %1152 = vmatprep.subr.mxu0 0.0
    %1153 = vmatpush1.msra.mxu0 0.0
    %1154 = vmatprep.subr.mxu0 0.0
    %1155 = vmatpush1.msra.mxu0 0.0
    %1156 = vmatprep.subr.mxu0 0.0
    %1157 = vmatpush1.msra.mxu0 0.0
    %1158 = vmatprep.subr.mxu0 0.0
    %1159 = vmatpush1.msra.mxu0 0.0
    %1160 = vmatprep.subr.mxu0 0.0
    %1161 = vmatpush1.msra.mxu0 0.0
    %1162 = vmatprep.subr.mxu0 0.0
    %1163 = vmatpush1.msra.mxu0 0.0
    %1164 = vmatprep.subr.mxu0 0.0
    %1165 = vmatpush1.msra.mxu0 0.0
    %1166 = vmatprep.subr.mxu0 0.0
    %1167 = vmatpush1.msra.mxu0 0.0
    %1168 = vmatprep.subr.mxu0 0.0
    %1169 = vmatpush1.msra.mxu0 0.0
    %1170 = vmatprep.subr.mxu0 0.0
    %1171 = vmatpush1.msra.mxu0 0.0
    %1172 = vmatprep.subr.mxu0 0.0
    %1173 = vmatpush1.msra.mxu0 0.0
    %1174 = vmatprep.subr.mxu0 0.0
    %1175 = vmatpush1.msra.mxu0 0.0
    %1176 = vmatprep.subr.mxu0 0.0
    %1177 = vmatpush1.msra.mxu0 0.0
    %1178 = vmatprep.subr.mxu0 0.0
    %1179 = vmatpush1.msra.mxu0 0.0
    %1180 = vmatprep.subr.mxu0 0.0
    %1181 = vmatpush1.msra.mxu0 0.0
    %1182 = vmatprep.subr.mxu0 0.0
    %1183 = vmatpush1.msra.mxu0 0.0
    %1184 = vmatprep.subr.mxu0 0.0
    %1185 = vmatpush1.msra.mxu0 0.0
    %1186 = vmatprep.subr.mxu0 0.0
    %1187 = vmatpush1.msra.mxu0 0.0
    %1188 = vmatprep.subr.mxu0 0.0
    %1189 = vmatpush1.msra.mxu0 0.0
    %1190 = vmatprep.subr.mxu0 0.0
    %1191 = vmatpush1.msra.mxu0 0.0
    %1192 = vmatprep.subr.mxu0 0.0
    %1193 = vmatpush1.msra.mxu0 0.0
    %1194 = vmatprep.subr.mxu0 0.0
    %1195 = vmatpush1.msra.mxu0 0.0
    %1196 = vmatprep.subr.mxu0 0.0
    %1197 = vmatpush1.msra.mxu0 0.0
    %1198 = vmatprep.subr.mxu0 0.0
    %1199 = vmatpush1.msra.mxu0 0.0
    %1200 = vmatprep.subr.mxu0 0.0
    %1201 = vmatpush1.msra.mxu0 0.0
    %1202 = vmatprep.subr.mxu0 0.0
    %1203 = vmatpush1.msra.mxu0 0.0
    %1204 = vmatprep.subr.mxu0 0.0
    %1205 = vmatpush1.msra.mxu0 0.0
    %1206 = vmatprep.subr.mxu0 0.0
    %1207 = vmatpush1.msra.mxu0 0.0
    %1208 = vmatprep.subr.mxu0 0.0
    %1209 = vmatpush1.msra.mxu0 0.0
    %1210 = vmatprep.subr.mxu0 0.0
    %1211 = vmatpush1.msra.mxu0 0.0
    %1212 = vmatprep.mubr.f32.mxu0 0.0
    %1213 = vmatmul.mubr.f32.gmra.mrb[0].mxu0 %v1143
    %v1214 = vpop.f32.mrb[0].mxu0
    %v1215 = vadd.f32 0.0, %v1214
    %v1216 = vpop.f32.mrb[0].mxu0
    %1217 = vmatprep.mubr.f32.mxu0 0.0
    %1218 = vmatmul.mubr.f32.gmra.mrb[0].mxu0 %v1146
    %v1219 = vpop.f32.mrb[0].mxu0
    %v1220 = vadd.f32 0.0, %v1219
    %v1221 = vpop.f32.mrb[0].mxu0
    %1222 = vdwg.mxu0
    %v1224 = vsel %vm194, %v968, 0
    %v1227 = vsel %vm194, %v973, 0
    %1229 = vmatprep.subr.mxu0 0.0
    %1230 = vmatpush1.msra.mxu0 %v979
    %1231 = vmatprep.subr.mxu0 0.0
    %1232 = vmatpush1.msra.mxu0 0.0
    %1233 = vmatprep.subr.mxu0 0.0
    %1234 = vmatpush1.msra.mxu0 0.0
    %1235 = vmatprep.subr.mxu0 0.0
    %1236 = vmatpush1.msra.mxu0 0.0
    %1237 = vmatprep.subr.mxu0 0.0
    %1238 = vmatpush1.msra.mxu0 0.0
    %1239 = vmatprep.subr.mxu0 0.0
    %1240 = vmatpush1.msra.mxu0 0.0
    %1241 = vmatprep.subr.mxu0 0.0
    %1242 = vmatpush1.msra.mxu0 0.0
    %1243 = vmatprep.subr.mxu0 0.0
    %1244 = vmatpush1.msra.mxu0 0.0
    %1245 = vmatprep.subr.mxu0 0.0
    %1246 = vmatpush1.msra.mxu0 0.0
    %1247 = vmatprep.subr.mxu0 0.0
    %1248 = vmatpush1.msra.mxu0 0.0
    %1249 = vmatprep.subr.mxu0 0.0
    %1250 = vmatpush1.msra.mxu0 0.0
    %1251 = vmatprep.subr.mxu0 0.0
    %1252 = vmatpush1.msra.mxu0 0.0
    %1253 = vmatprep.subr.mxu0 0.0
    %1254 = vmatpush1.msra.mxu0 0.0
    %1255 = vmatprep.subr.mxu0 0.0
    %1256 = vmatpush1.msra.mxu0 0.0
    %1257 = vmatprep.subr.mxu0 0.0
    %1258 = vmatpush1.msra.mxu0 0.0
    %1259 = vmatprep.subr.mxu0 0.0
    %1260 = vmatpush1.msra.mxu0 0.0
    %1261 = vmatprep.subr.mxu0 0.0
    %1262 = vmatpush1.msra.mxu0 0.0
    %1263 = vmatprep.subr.mxu0 0.0
    %1264 = vmatpush1.msra.mxu0 0.0
    %1265 = vmatprep.subr.mxu0 0.0
    %1266 = vmatpush1.msra.mxu0 0.0
    %1267 = vmatprep.subr.mxu0 0.0
    %1268 = vmatpush1.msra.mxu0 0.0
    %1269 = vmatprep.subr.mxu0 0.0
    %1270 = vmatpush1.msra.mxu0 0.0
    %1271 = vmatprep.subr.mxu0 0.0
    %1272 = vmatpush1.msra.mxu0 0.0
    %1273 = vmatprep.subr.mxu0 0.0
    %1274 = vmatpush1.msra.mxu0 0.0
    %1275 = vmatprep.subr.mxu0 0.0
    %1276 = vmatpush1.msra.mxu0 0.0
    %1277 = vmatprep.subr.mxu0 0.0
    %1278 = vmatpush1.msra.mxu0 0.0
    %1279 = vmatprep.subr.mxu0 0.0
    %1280 = vmatpush1.msra.mxu0 0.0
    %1281 = vmatprep.subr.mxu0 0.0
    %1282 = vmatpush1.msra.mxu0 0.0
    %1283 = vmatprep.subr.mxu0 0.0
    %1284 = vmatpush1.msra.mxu0 0.0
    %1285 = vmatprep.subr.mxu0 0.0
    %1286 = vmatpush1.msra.mxu0 0.0
    %1287 = vmatprep.subr.mxu0 0.0
    %1288 = vmatpush1.msra.mxu0 0.0
    %1289 = vmatprep.subr.mxu0 0.0
    %1290 = vmatpush1.msra.mxu0 0.0
    %1291 = vmatprep.subr.mxu0 0.0
    %1292 = vmatpush1.msra.mxu0 0.0
    %1293 = vmatprep.mubr.f32.mxu0 0.0
    %1294 = vmatmul.mubr.f32.gmra.mrb[0].mxu0 %v1224
    %v1295 = vpop.f32.mrb[0].mxu0
    %v1296 = vadd.f32 0.0, %v1295
    %v1297 = vpop.f32.mrb[0].mxu0
    %1298 = vmatprep.mubr.f32.mxu0 0.0
    %1299 = vmatmul.mubr.f32.gmra.mrb[0].mxu0 %v1227
    %v1300 = vpop.f32.mrb[0].mxu0
    %v1301 = vadd.f32 0.0, %v1300
    %v1302 = vpop.f32.mrb[0].mxu0
    %1303 = vdwg.mxu0
    %v1304 = vsel %vm94, %v1053, 0.0
    %v1305 = vsel %vm94, %v1134, 0.0
    %v1306 = vadd.f32 %v1304, %v1305
    %v1307 = vsel %vm94, %v1215, 0.0
    %v1308 = vadd.f32 %v1306, %v1307
    %v1309 = vsel %vm94, %v1296, 0.0
    %v1310 = vadd.f32 %v1308, %v1309
    %v1311 = vsel %vm94, %v1058, 0.0
    %v1312 = vsel %vm94, %v1139, 0.0
    %v1313 = vadd.f32 %v1311, %v1312
    %v1314 = vsel %vm94, %v1220, 0.0
    %v1315 = vadd.f32 %v1313, %v1314
    %v1316 = vsel %vm94, %v1301, 0.0
    %v1317 = vadd.f32 %v1315, %v1316
    %v1318 = vld [vmem:[%s5] sm:$0x1]
    %v1320 = vlaneseq
    %v1321 = vshrl.u32 %v1320, 7
    %v1322 = vsub.s32 0, %v1321
    %v1323 = vrot.slane %v1318, %v1322
    %v1325 = vadd.f32 %v1310, %v1323
    %v1326 = vadd.f32 %v1317, %v1323
    %v1327 = vadd.f32 %v1325, %v79
    %v1328 = vadd.f32 %v1326, %v80
    %v1329 = vsel %vm94, %v1327, 0.0
    %1330 = vadd.xlane.f32.xlu0 %v1329
    %v1331 = vpop.xlane.xlu0 %1330
    %v1332 = vsel %vm94, %v1328, 0.0
    %1333 = vadd.xlane.f32.xlu0 %v1332
    %v1334 = vpop.xlane.xlu0 %1333
    %v1335 = vrcp.pop 32.0
    %v1336 = vmul.f32 %v1331, %v1335
    %v1337 = vmul.f32 %v1334, %v1335
    %v1338 = vsub.f32 %v1327, %v1336
    %v1339 = vsub.f32 %v1328, %v1337
    %v1340 = vmul.f32 %v1338, %v1338
    %v1341 = vmul.f32 %v1339, %v1339
    %v1342 = vsel %vm94, %v1340, 0.0
    %1343 = vadd.xlane.f32.xlu0 %v1342
    %v1344 = vpop.xlane.xlu0 %1343
    %v1345 = vsel %vm94, %v1341, 0.0
    %1346 = vadd.xlane.f32.xlu0 %v1345
    %v1347 = vpop.xlane.xlu0 %1346
    %v1348 = vmul.f32 %v1344, %v1335
    %v1349 = vmul.f32 %v1347, %v1335
    %v1350 = vadd.f32 %v1348, 1e-12
    %v1351 = vadd.f32 %v1349, 1e-12
    %v1352 = vrsqrt.pop %v1350
    %v1353 = vrsqrt.pop %v1351
    %v1354 = vmul.f32 %v1338, %v1352
    %v1355 = vmul.f32 %v1339, %v1353
    %s1356 = scalar_lea.vmem %s5, 1
    %v1357 = vld [vmem:[%s1356] sm:$0x1]
    %v1359 = vlaneseq
    %v1360 = vshrl.u32 %v1359, 7
    %v1361 = vsub.s32 0, %v1360
    %v1362 = vrot.slane %v1357, %v1361
    %v1364 = vmul.f32 %v1354, %v1362
    %v1365 = vmul.f32 %v1355, %v1362
    %s1366 = scalar_lea.vmem %s5, 2
    %v1367 = vld [vmem:[%s1366] sm:$0x1]
    %v1369 = vlaneseq
    %v1370 = vshrl.u32 %v1369, 7
    %v1371 = vsub.s32 0, %v1370
    %v1372 = vrot.slane %v1367, %v1371
    %v1374 = vadd.f32 %v1364, %v1372
    %v1375 = vadd.f32 %v1365, %v1372
    %1376 = vst.msk [vmem:[#allocation10] sm:$0xff] %vm94, %v1374
    %1377 = vst.msk [vmem:[#allocation10 + $0x8] sm:$0xff] %vm94, %v1375
    // Predicated region
    $region42: #{tpu_custom_call.1} parent=1 // pred_check
      _
    $region43: #{tpu_custom_call.1} parent=1 // pred_check_branch
      %1379 = sbr.rel (0) target = $region45
    $region44: #{tpu_custom_call.1} parent=1 // pred_region
      %s1381 = ssub.s32 256, 256
      %1382 = vsyncadd [#allocation4], %s1381
      %s1383 = sshll.u32 [#allocation10], 4
      %s1384 = int_to_ptr.vmem [resolvable:$true] %s1383
      %1389 = dma.vmem_to_hbm [thread:$0]  %s1384, 256, %s6, [#allocation4], 128, 128, 8
    $region45: #{tpu_custom_call.1} parent=1 // pred_fallthru
      _
    // Predicated region
    $region46: #{tpu_custom_call.1} parent=1 // pred_check
      _
    $region47: #{tpu_custom_call.1} parent=1 // pred_check_branch
      %1391 = sbr.rel (0) target = $region49
    $region48: #{tpu_custom_call.1} parent=1 // pred_region
      %1392 = dma.done [#allocation4], 256
    $region49: #{tpu_custom_call.1} parent=1 // pred_fallthru
      _
    %1393 = vsyncpa [#allocation3], 1
    %1394 = vsyncpa [#allocation6], 1
    %1395 = vsyncpa [#allocation9], 1
    %1396 = vsyncpa [#allocation4], 1

</llo_original>
